<compile_context>
chip_gen: v5e
topology: v5e:2x2
jax: 0.10.0
libtpu: 0.0.40
codegen_flags: <defaults>
</compile_context>

<pallas_src>
import jax
import jax.numpy as jnp
from jax.experimental import pallas as pl
from jax.experimental.pallas import tpu as pltpu

NUM_RES_BLOCKS = 5
LANE = 128  # TPU lane width; pad feature dims to multiples of this.


def _round_up(x, m):
    return (x + m - 1) // m * m


# ----------------------------------------------------------------------------- kernel
def decoder_kernel(p_ref, zc_ref,
                   wp_ref,
                   w0_ref, b0_ref,      # stacked (5, Hp, Hp) bf16 / (5, 1, Hp) f32
                   w1_ref, b1_ref,      # stacked (5, Hp, Hp) bf16 / (5, 1, Hp) f32
                   wout_ref, bout_ref,  # (Hp, Zp) bf16 / (1, Zp) f32
                   out_ref):
    # net = fc_p(p) + (bp + fc_z(z) + fc_c(c))   [zc precomputed per-row in wrapper]
    p = p_ref[...].astype(jnp.bfloat16)                                  # (TM, D)
    net = jnp.dot(p, wp_ref[...], preferred_element_type=jnp.float32)    # (TM, Hp) f32
    net = net + zc_ref[...]                                              # f32 residual stream

    # 5 x ResnetBlockFC(hidden): net = net + fc_1(relu(fc_0(relu(net)))), identity shortcut.
    # Residual adds / biases stay f32; only the MXU operands are bf16.
    for i in range(NUM_RES_BLOCKS):  # static unroll
        a0 = jnp.maximum(net, 0.0).astype(jnp.bfloat16)
        h = jnp.dot(a0, w0_ref[i], preferred_element_type=jnp.float32) + b0_ref[i]
        a1 = jnp.maximum(h, 0.0).astype(jnp.bfloat16)
        net = net + jnp.dot(a1, w1_ref[i], preferred_element_type=jnp.float32) + b1_ref[i]

    # fc_out(relu(net)) — Zp is a multiple of 128, so this store is lane-dense.
    a = jnp.maximum(net, 0.0).astype(jnp.bfloat16)
    out = jnp.dot(a, wout_ref[...], preferred_element_type=jnp.float32) + bout_ref[...]
    out_ref[...] = out.astype(out_ref.dtype)


# ----------------------------------------------------------------------------- wrapper
def decoder_forward(p, z, c, params, *, tile_rows=128):
    """p: (B, T, D) f32, z: (B, z_dim), c: (B, c_dim) -> (B, T, z_resolution) f32."""
    B, T, D = p.shape
    H = params["wp"].shape[1]
    Z = params["wout"].shape[1]
    Hp = _round_up(H, LANE)
    Zp = _round_up(Z, LANE)

    # ---- Hoist per-batch fc_z / fc_c (M=1 matmuls) out of the kernel. -------------
    zc = jnp.broadcast_to(params["bp"].astype(jnp.float32)[None, :], (B, H))
    if params.get("wz") is not None and z is not None and z.shape[-1] > 0:
        zc = zc + z.astype(jnp.float32) @ params["wz"] + params["bz"]
    if params.get("wc") is not None and c is not None and c.shape[-1] > 0:
        zc = zc + c.astype(jnp.float32) @ params["wc"] + params["bc"]

    # ---- Flatten (B, T) -> rows, pad rows to a multiple of the row tile. ----------
    rows = B * T
    rows_p = _round_up(rows, tile_rows)
    p_flat = p.reshape(rows, D).astype(jnp.float32)
    p_flat = jnp.pad(p_flat, ((0, rows_p - rows), (0, 0)))
    zc_rows = jnp.repeat(zc, T, axis=0)                                   # (rows, H)
    zc_rows = jnp.pad(zc_rows, ((0, rows_p - rows), (0, Hp - H)))         # (rows_p, Hp)

    # ---- Zero-pad feature dims to lane multiples; cast matmul weights to bf16. ----
    wp = jnp.pad(params["wp"], ((0, 0), (0, Hp - H))).astype(jnp.bfloat16)            # (D, Hp)
    w0 = jnp.pad(params["w0"], ((0, 0), (0, Hp - H), (0, Hp - H))).astype(jnp.bfloat16)
    w1 = jnp.pad(params["w1"], ((0, 0), (0, Hp - H), (0, Hp - H))).astype(jnp.bfloat16)
    wout = jnp.pad(params["wout"], ((0, Hp - H), (0, Zp - Z))).astype(jnp.bfloat16)   # (Hp, Zp)
    b0 = jnp.pad(params["b0"], ((0, 0), (0, Hp - H))).astype(jnp.float32)[:, None, :]  # (5,1,Hp)
    b1 = jnp.pad(params["b1"], ((0, 0), (0, Hp - H))).astype(jnp.float32)[:, None, :]  # (5,1,Hp)
    bout = jnp.pad(params["bout"], (0, Zp - Z)).astype(jnp.float32)[None, :]           # (1,Zp)

    weight_args = [wp, w0, b0, w1, b1, wout, bout]

    def full_spec(arr):
        nd = arr.ndim
        return pl.BlockSpec(arr.shape, lambda i, _nd=nd: (0,) * _nd)

    grid = (rows_p // tile_rows,)
    in_specs = [
        pl.BlockSpec((tile_rows, D), lambda i: (i, 0)),    # p row tile
        pl.BlockSpec((tile_rows, Hp), lambda i: (i, 0)),   # per-row (bp + fc_z + fc_c)
    ] + [full_spec(w) for w in weight_args]
    out_spec = pl.BlockSpec((tile_rows, Zp), lambda i: (i, 0))

    out = pl.pallas_call(
        decoder_kernel,
        out_shape=jax.ShapeDtypeStruct((rows_p, Zp), jnp.float32),
        grid=grid,
        in_specs=in_specs,
        out_specs=out_spec,
        compiler_params=pltpu.CompilerParams(
            # Row tiles are independent -> megacore sharding on v7x.
            dimension_semantics=("parallel",)),
    )(p_flat, zc_rows, *weight_args)

    return out[:rows, :Z].reshape(B, T, Z)


# ----------------------------------------------------------------------------- params
def make_params(key, dim, z_dim, c_dim, hidden_size, z_resolution):
    """Deterministic synthetic parameters (shapes match the PyTorch module)."""
    ks = jax.random.split(key, 8)
    scale = 0.1

    def lin(k, fan_in, fan_out):
        kw, kb = jax.random.split(k)
        w = scale * jax.random.normal(kw, (fan_in, fan_out), jnp.float32)
        b = scale * jax.random.normal(kb, (fan_out,), jnp.float32)
        return w, b

    wp, bp = lin(ks[0], dim, hidden_size)
    wz, bz = lin(ks[1], z_dim, hidden_size)
    wc, bc = lin(ks[2], c_dim, hidden_size)
    w0 = scale * jax.random.normal(ks[3], (NUM_RES_BLOCKS, hidden_size, hidden_size), jnp.float32)
    b0 = scale * jax.random.normal(ks[4], (NUM_RES_BLOCKS, hidden_size), jnp.float32)
    # NOTE: PyTorch ResnetBlockFC zero-inits fc_1.weight; random values here so the
    # kernel path is actually exercised (init values are not forward semantics).
    w1 = scale * jax.random.normal(ks[5], (NUM_RES_BLOCKS, hidden_size, hidden_size), jnp.float32)
    b1 = scale * jax.random.normal(ks[6], (NUM_RES_BLOCKS, hidden_size), jnp.float32)
    wout, bout = lin(ks[7], hidden_size, z_resolution)
    return dict(wp=wp, bp=bp, wz=wz, bz=bz, wc=wc, bc=bc,
                w0=w0, b0=b0, w1=w1, b1=b1, wout=wout, bout=bout)


# ----------------------------------------------------------------------------- references
def decoder_reference(p, z, c, params):
    """Pure-JAX f32 reference mirroring the PyTorch forward pass exactly."""
    net = jnp.einsum("btd,dh->bth", p, params["wp"]) + params["bp"]
    net = net + (z @ params["wz"] + params["bz"])[:, None, :]
    net = net + (c @ params["wc"] + params["bc"])[:, None, :]
    for i in range(NUM_RES_BLOCKS):
        h = jnp.einsum("bth,hk->btk", jnp.maximum(net, 0.0), params["w0"][i]) + params["b0"][i]
        dx = jnp.einsum("btk,kh->bth", jnp.maximum(h, 0.0), params["w1"][i]) + params["b1"][i]
        net = net + dx
    return jnp.einsum("bth,ho->bto", jnp.maximum(net, 0.0), params["wout"]) + params["bout"]


def decoder_reference_mixed(p, z, c, params):
    """Pure-JAX reference mirroring the kernel's bf16-weight / f32-accumulate numerics."""
    bf = jnp.bfloat16
    f32 = jnp.float32
    net = jnp.einsum("btd,dh->bth", p.astype(bf), params["wp"].astype(bf),
                     preferred_element_type=f32)
    zc = params["bp"] + z @ params["wz"] + params["bz"] + c @ params["wc"] + params["bc"]
    net = net + zc[:, None, :]
    for i in range(NUM_RES_BLOCKS):
        a0 = jnp.maximum(net, 0.0).astype(bf)
        h = jnp.einsum("bth,hk->btk", a0, params["w0"][i].astype(bf),
                       preferred_element_type=f32) + params["b0"][i]
        a1 = jnp.maximum(h, 0.0).astype(bf)
        net = net + jnp.einsum("btk,kh->bth", a1, params["w1"][i].astype(bf),
                               preferred_element_type=f32) + params["b1"][i]
    a = jnp.maximum(net, 0.0).astype(bf)
    return jnp.einsum("bth,ho->bto", a, params["wout"].astype(bf),
                      preferred_element_type=f32) + params["bout"]


# ----------------------------------------------------------------------------- main
if __name__ == "__main__":
    # Small shapes consistent with the module's forward signature.
    B, T, D = 2, 8, 2
    z_dim, c_dim, hidden_size, z_resolution = 16, 16, 32, 8

    key = jax.random.PRNGKey(0)
    kp, kz, kc, kw = jax.random.split(key, 4)
    p = jax.random.normal(kp, (B, T, D), jnp.float32)
    z = jax.random.normal(kz, (B, z_dim), jnp.float32)
    c = jax.random.normal(kc, (B, c_dim), jnp.float32)
    params = make_params(kw, D, z_dim, c_dim, hidden_size, z_resolution)

    out = jax.block_until_ready(decoder_forward(p, z, c, params))
    assert out.shape == (B, T, z_resolution)

    # Tight check vs. a reference using identical bf16-weight / f32-accumulate numerics.
    ref_mixed = decoder_reference_mixed(p, z, c, params)
    assert jnp.allclose(out, ref_mixed, atol=1e-2, rtol=1e-2), "mismatch vs mixed-precision reference"
    # Loose check vs. the exact f32 PyTorch semantics (bf16 weight quantization error only).
    ref_f32 = decoder_reference(p, z, c, params)
    assert jnp.allclose(out, ref_f32, atol=5e-2, rtol=5e-2), "mismatch vs f32 reference"

    print("KERNEL_OK")
</pallas_src>

<mosaic_0001>
module attributes {stable_mosaic.version = 11 : i64} {
  func.func @decoder_kernel(%arg0: i32, %arg1: memref<128x2xf32, #tpu.memory_space<vmem>>, %arg2: memref<128x128xf32, #tpu.memory_space<vmem>>, %arg3: memref<2x128xbf16, #tpu.memory_space<vmem>>, %arg4: memref<5x128x128xbf16, #tpu.memory_space<vmem>>, %arg5: memref<5x1x128xf32, #tpu.memory_space<vmem>>, %arg6: memref<5x128x128xbf16, #tpu.memory_space<vmem>>, %arg7: memref<5x1x128xf32, #tpu.memory_space<vmem>>, %arg8: memref<128x128xbf16, #tpu.memory_space<vmem>>, %arg9: memref<1x128xf32, #tpu.memory_space<vmem>>, %arg10: memref<128x128xf32, #tpu.memory_space<vmem>>) attributes {dimension_semantics = [#tpu.dimension_semantics<parallel>], iteration_bounds = array<i64: 1>, scalar_prefetch = 0 : i64, scratch_operands = 0 : i64, tpu.core_type = #tpu.core_type<tc>, window_params = [{transform_indices = @transform_0, window_bounds = array<i64: 128, 2>}, {transform_indices = @transform_1, window_bounds = array<i64: 128, 128>}, {pipeline_mode = #tpu.pipeline_mode<synchronous>, transform_indices = @transform_2, window_bounds = array<i64: 2, 128>}, {pipeline_mode = #tpu.pipeline_mode<synchronous>, transform_indices = @transform_3, window_bounds = array<i64: 5, 128, 128>}, {pipeline_mode = #tpu.pipeline_mode<synchronous>, transform_indices = @transform_4, window_bounds = array<i64: 5, 1, 128>}, {pipeline_mode = #tpu.pipeline_mode<synchronous>, transform_indices = @transform_5, window_bounds = array<i64: 5, 128, 128>}, {pipeline_mode = #tpu.pipeline_mode<synchronous>, transform_indices = @transform_6, window_bounds = array<i64: 5, 1, 128>}, {pipeline_mode = #tpu.pipeline_mode<synchronous>, transform_indices = @transform_7, window_bounds = array<i64: 128, 128>}, {pipeline_mode = #tpu.pipeline_mode<synchronous>, transform_indices = @transform_8, window_bounds = array<i64: 1, 128>}, {transform_indices = @transform_9, window_bounds = array<i64: 128, 128>}]} {
    %c0 = arith.constant 0 : index
    %c0_0 = arith.constant 0 : index
    %0 = vector.load %arg1[%c0, %c0_0] : memref<128x2xf32, #tpu.memory_space<vmem>>, vector<128x2xf32>
    %1 = arith.truncf %0 : vector<128x2xf32> to vector<128x2xbf16>
    %c0_1 = arith.constant 0 : index
    %c0_2 = arith.constant 0 : index
    %2 = vector.load %arg3[%c0_1, %c0_2] : memref<2x128xbf16, #tpu.memory_space<vmem>>, vector<2x128xbf16>
    %cst = arith.constant dense<0.000000e+00> : vector<128x128xf32>
    %3 = tpu.matmul %1, %2, %cst {dimension_numbers = #tpu.dot_dimension_numbers<[1], [0], [0], [1], [0, 0, 1, 1], [], []>} : vector<128x2xbf16>, vector<2x128xbf16>, vector<128x128xf32> -> vector<128x128xf32>
    %c0_3 = arith.constant 0 : index
    %c0_4 = arith.constant 0 : index
    %4 = vector.load %arg2[%c0_3, %c0_4] : memref<128x128xf32, #tpu.memory_space<vmem>>, vector<128x128xf32>
    %5 = arith.addf %3, %4 : vector<128x128xf32>
    %cst_5 = arith.constant 0.000000e+00 : f32
    %6 = vector.broadcast %cst_5 : f32 to vector<128x128xf32>
    %7 = arith.maximumf %5, %6 : vector<128x128xf32>
    %8 = arith.truncf %7 : vector<128x128xf32> to vector<128x128xbf16>
    %c0_6 = arith.constant 0 : index
    %c0_7 = arith.constant 0 : index
    %c0_8 = arith.constant 0 : index
    %9 = vector.load %arg4[%c0_6, %c0_7, %c0_8] : memref<5x128x128xbf16, #tpu.memory_space<vmem>>, vector<1x128x128xbf16>
    %10 = vector.shape_cast %9 : vector<1x128x128xbf16> to vector<128x128xbf16>
    %cst_9 = arith.constant dense<0.000000e+00> : vector<128x128xf32>
    %11 = tpu.matmul %8, %10, %cst_9 {dimension_numbers = #tpu.dot_dimension_numbers<[1], [0], [0], [1], [0, 0, 1, 1], [], []>} : vector<128x128xbf16>, vector<128x128xbf16>, vector<128x128xf32> -> vector<128x128xf32>
    %c0_10 = arith.constant 0 : index
    %c0_11 = arith.constant 0 : index
    %c0_12 = arith.constant 0 : index
    %12 = vector.load %arg5[%c0_10, %c0_11, %c0_12] : memref<5x1x128xf32, #tpu.memory_space<vmem>>, vector<1x1x128xf32>
    %13 = vector.shape_cast %12 : vector<1x1x128xf32> to vector<1x128xf32>
    %14 = vector.broadcast %13 : vector<1x128xf32> to vector<128x128xf32>
    %15 = arith.addf %11, %14 : vector<128x128xf32>
    %cst_13 = arith.constant 0.000000e+00 : f32
    %16 = vector.broadcast %cst_13 : f32 to vector<128x128xf32>
    %17 = arith.maximumf %15, %16 : vector<128x128xf32>
    %18 = arith.truncf %17 : vector<128x128xf32> to vector<128x128xbf16>
    %c0_14 = arith.constant 0 : index
    %c0_15 = arith.constant 0 : index
    %c0_16 = arith.constant 0 : index
    %19 = vector.load %arg6[%c0_14, %c0_15, %c0_16] : memref<5x128x128xbf16, #tpu.memory_space<vmem>>, vector<1x128x128xbf16>
    %20 = vector.shape_cast %19 : vector<1x128x128xbf16> to vector<128x128xbf16>
    %cst_17 = arith.constant dense<0.000000e+00> : vector<128x128xf32>
    %21 = tpu.matmul %18, %20, %cst_17 {dimension_numbers = #tpu.dot_dimension_numbers<[1], [0], [0], [1], [0, 0, 1, 1], [], []>} : vector<128x128xbf16>, vector<128x128xbf16>, vector<128x128xf32> -> vector<128x128xf32>
    %22 = arith.addf %5, %21 : vector<128x128xf32>
    %c0_18 = arith.constant 0 : index
    %c0_19 = arith.constant 0 : index
    %c0_20 = arith.constant 0 : index
    %23 = vector.load %arg7[%c0_18, %c0_19, %c0_20] : memref<5x1x128xf32, #tpu.memory_space<vmem>>, vector<1x1x128xf32>
    %24 = vector.shape_cast %23 : vector<1x1x128xf32> to vector<1x128xf32>
    %25 = vector.broadcast %24 : vector<1x128xf32> to vector<128x128xf32>
    %26 = arith.addf %22, %25 : vector<128x128xf32>
    %cst_21 = arith.constant 0.000000e+00 : f32
    %27 = vector.broadcast %cst_21 : f32 to vector<128x128xf32>
    %28 = arith.maximumf %26, %27 : vector<128x128xf32>
    %29 = arith.truncf %28 : vector<128x128xf32> to vector<128x128xbf16>
    %c1 = arith.constant 1 : index
    %c0_22 = arith.constant 0 : index
    %c0_23 = arith.constant 0 : index
    %30 = vector.load %arg4[%c1, %c0_22, %c0_23] : memref<5x128x128xbf16, #tpu.memory_space<vmem>>, vector<1x128x128xbf16>
    %31 = vector.shape_cast %30 : vector<1x128x128xbf16> to vector<128x128xbf16>
    %cst_24 = arith.constant dense<0.000000e+00> : vector<128x128xf32>
    %32 = tpu.matmul %29, %31, %cst_24 {dimension_numbers = #tpu.dot_dimension_numbers<[1], [0], [0], [1], [0, 0, 1, 1], [], []>} : vector<128x128xbf16>, vector<128x128xbf16>, vector<128x128xf32> -> vector<128x128xf32>
    %c1_25 = arith.constant 1 : index
    %c0_26 = arith.constant 0 : index
    %c0_27 = arith.constant 0 : index
    %33 = vector.load %arg5[%c1_25, %c0_26, %c0_27] : memref<5x1x128xf32, #tpu.memory_space<vmem>>, vector<1x1x128xf32>
    %34 = vector.shape_cast %33 : vector<1x1x128xf32> to vector<1x128xf32>
    %35 = vector.broadcast %34 : vector<1x128xf32> to vector<128x128xf32>
    %36 = arith.addf %32, %35 : vector<128x128xf32>
    %cst_28 = arith.constant 0.000000e+00 : f32
    %37 = vector.broadcast %cst_28 : f32 to vector<128x128xf32>
    %38 = arith.maximumf %36, %37 : vector<128x128xf32>
    %39 = arith.truncf %38 : vector<128x128xf32> to vector<128x128xbf16>
    %c1_29 = arith.constant 1 : index
    %c0_30 = arith.constant 0 : index
    %c0_31 = arith.constant 0 : index
    %40 = vector.load %arg6[%c1_29, %c0_30, %c0_31] : memref<5x128x128xbf16, #tpu.memory_space<vmem>>, vector<1x128x128xbf16>
    %41 = vector.shape_cast %40 : vector<1x128x128xbf16> to vector<128x128xbf16>
    %cst_32 = arith.constant dense<0.000000e+00> : vector<128x128xf32>
    %42 = tpu.matmul %39, %41, %cst_32 {dimension_numbers = #tpu.dot_dimension_numbers<[1], [0], [0], [1], [0, 0, 1, 1], [], []>} : vector<128x128xbf16>, vector<128x128xbf16>, vector<128x128xf32> -> vector<128x128xf32>
    %43 = arith.addf %26, %42 : vector<128x128xf32>
    %c1_33 = arith.constant 1 : index
    %c0_34 = arith.constant 0 : index
    %c0_35 = arith.constant 0 : index
    %44 = vector.load %arg7[%c1_33, %c0_34, %c0_35] : memref<5x1x128xf32, #tpu.memory_space<vmem>>, vector<1x1x128xf32>
    %45 = vector.shape_cast %44 : vector<1x1x128xf32> to vector<1x128xf32>
    %46 = vector.broadcast %45 : vector<1x128xf32> to vector<128x128xf32>
    %47 = arith.addf %43, %46 : vector<128x128xf32>
    %cst_36 = arith.constant 0.000000e+00 : f32
    %48 = vector.broadcast %cst_36 : f32 to vector<128x128xf32>
    %49 = arith.maximumf %47, %48 : vector<128x128xf32>
    %50 = arith.truncf %49 : vector<128x128xf32> to vector<128x128xbf16>
    %c2 = arith.constant 2 : index
    %c0_37 = arith.constant 0 : index
    %c0_38 = arith.constant 0 : index
    %51 = vector.load %arg4[%c2, %c0_37, %c0_38] : memref<5x128x128xbf16, #tpu.memory_space<vmem>>, vector<1x128x128xbf16>
    %52 = vector.shape_cast %51 : vector<1x128x128xbf16> to vector<128x128xbf16>
    %cst_39 = arith.constant dense<0.000000e+00> : vector<128x128xf32>
    %53 = tpu.matmul %50, %52, %cst_39 {dimension_numbers = #tpu.dot_dimension_numbers<[1], [0], [0], [1], [0, 0, 1, 1], [], []>} : vector<128x128xbf16>, vector<128x128xbf16>, vector<128x128xf32> -> vector<128x128xf32>
    %c2_40 = arith.constant 2 : index
    %c0_41 = arith.constant 0 : index
    %c0_42 = arith.constant 0 : index
    %54 = vector.load %arg5[%c2_40, %c0_41, %c0_42] : memref<5x1x128xf32, #tpu.memory_space<vmem>>, vector<1x1x128xf32>
    %55 = vector.shape_cast %54 : vector<1x1x128xf32> to vector<1x128xf32>
    %56 = vector.broadcast %55 : vector<1x128xf32> to vector<128x128xf32>
    %57 = arith.addf %53, %56 : vector<128x128xf32>
    %cst_43 = arith.constant 0.000000e+00 : f32
    %58 = vector.broadcast %cst_43 : f32 to vector<128x128xf32>
    %59 = arith.maximumf %57, %58 : vector<128x128xf32>
    %60 = arith.truncf %59 : vector<128x128xf32> to vector<128x128xbf16>
    %c2_44 = arith.constant 2 : index
    %c0_45 = arith.constant 0 : index
    %c0_46 = arith.constant 0 : index
    %61 = vector.load %arg6[%c2_44, %c0_45, %c0_46] : memref<5x128x128xbf16, #tpu.memory_space<vmem>>, vector<1x128x128xbf16>
    %62 = vector.shape_cast %61 : vector<1x128x128xbf16> to vector<128x128xbf16>
    %cst_47 = arith.constant dense<0.000000e+00> : vector<128x128xf32>
    %63 = tpu.matmul %60, %62, %cst_47 {dimension_numbers = #tpu.dot_dimension_numbers<[1], [0], [0], [1], [0, 0, 1, 1], [], []>} : vector<128x128xbf16>, vector<128x128xbf16>, vector<128x128xf32> -> vector<128x128xf32>
    %64 = arith.addf %47, %63 : vector<128x128xf32>
    %c2_48 = arith.constant 2 : index
    %c0_49 = arith.constant 0 : index
    %c0_50 = arith.constant 0 : index
    %65 = vector.load %arg7[%c2_48, %c0_49, %c0_50] : memref<5x1x128xf32, #tpu.memory_space<vmem>>, vector<1x1x128xf32>
    %66 = vector.shape_cast %65 : vector<1x1x128xf32> to vector<1x128xf32>
    %67 = vector.broadcast %66 : vector<1x128xf32> to vector<128x128xf32>
    %68 = arith.addf %64, %67 : vector<128x128xf32>
    %cst_51 = arith.constant 0.000000e+00 : f32
    %69 = vector.broadcast %cst_51 : f32 to vector<128x128xf32>
    %70 = arith.maximumf %68, %69 : vector<128x128xf32>
    %71 = arith.truncf %70 : vector<128x128xf32> to vector<128x128xbf16>
    %c3 = arith.constant 3 : index
    %c0_52 = arith.constant 0 : index
    %c0_53 = arith.constant 0 : index
    %72 = vector.load %arg4[%c3, %c0_52, %c0_53] : memref<5x128x128xbf16, #tpu.memory_space<vmem>>, vector<1x128x128xbf16>
    %73 = vector.shape_cast %72 : vector<1x128x128xbf16> to vector<128x128xbf16>
    %cst_54 = arith.constant dense<0.000000e+00> : vector<128x128xf32>
    %74 = tpu.matmul %71, %73, %cst_54 {dimension_numbers = #tpu.dot_dimension_numbers<[1], [0], [0], [1], [0, 0, 1, 1], [], []>} : vector<128x128xbf16>, vector<128x128xbf16>, vector<128x128xf32> -> vector<128x128xf32>
    %c3_55 = arith.constant 3 : index
    %c0_56 = arith.constant 0 : index
    %c0_57 = arith.constant 0 : index
    %75 = vector.load %arg5[%c3_55, %c0_56, %c0_57] : memref<5x1x128xf32, #tpu.memory_space<vmem>>, vector<1x1x128xf32>
    %76 = vector.shape_cast %75 : vector<1x1x128xf32> to vector<1x128xf32>
    %77 = vector.broadcast %76 : vector<1x128xf32> to vector<128x128xf32>
    %78 = arith.addf %74, %77 : vector<128x128xf32>
    %cst_58 = arith.constant 0.000000e+00 : f32
    %79 = vector.broadcast %cst_58 : f32 to vector<128x128xf32>
    %80 = arith.maximumf %78, %79 : vector<128x128xf32>
    %81 = arith.truncf %80 : vector<128x128xf32> to vector<128x128xbf16>
    %c3_59 = arith.constant 3 : index
    %c0_60 = arith.constant 0 : index
    %c0_61 = arith.constant 0 : index
    %82 = vector.load %arg6[%c3_59, %c0_60, %c0_61] : memref<5x128x128xbf16, #tpu.memory_space<vmem>>, vector<1x128x128xbf16>
    %83 = vector.shape_cast %82 : vector<1x128x128xbf16> to vector<128x128xbf16>
    %cst_62 = arith.constant dense<0.000000e+00> : vector<128x128xf32>
    %84 = tpu.matmul %81, %83, %cst_62 {dimension_numbers = #tpu.dot_dimension_numbers<[1], [0], [0], [1], [0, 0, 1, 1], [], []>} : vector<128x128xbf16>, vector<128x128xbf16>, vector<128x128xf32> -> vector<128x128xf32>
    %85 = arith.addf %68, %84 : vector<128x128xf32>
    %c3_63 = arith.constant 3 : index
    %c0_64 = arith.constant 0 : index
    %c0_65 = arith.constant 0 : index
    %86 = vector.load %arg7[%c3_63, %c0_64, %c0_65] : memref<5x1x128xf32, #tpu.memory_space<vmem>>, vector<1x1x128xf32>
    %87 = vector.shape_cast %86 : vector<1x1x128xf32> to vector<1x128xf32>
    %88 = vector.broadcast %87 : vector<1x128xf32> to vector<128x128xf32>
    %89 = arith.addf %85, %88 : vector<128x128xf32>
    %cst_66 = arith.constant 0.000000e+00 : f32
    %90 = vector.broadcast %cst_66 : f32 to vector<128x128xf32>
    %91 = arith.maximumf %89, %90 : vector<128x128xf32>
    %92 = arith.truncf %91 : vector<128x128xf32> to vector<128x128xbf16>
    %c4 = arith.constant 4 : index
    %c0_67 = arith.constant 0 : index
    %c0_68 = arith.constant 0 : index
    %93 = vector.load %arg4[%c4, %c0_67, %c0_68] : memref<5x128x128xbf16, #tpu.memory_space<vmem>>, vector<1x128x128xbf16>
    %94 = vector.shape_cast %93 : vector<1x128x128xbf16> to vector<128x128xbf16>
    %cst_69 = arith.constant dense<0.000000e+00> : vector<128x128xf32>
    %95 = tpu.matmul %92, %94, %cst_69 {dimension_numbers = #tpu.dot_dimension_numbers<[1], [0], [0], [1], [0, 0, 1, 1], [], []>} : vector<128x128xbf16>, vector<128x128xbf16>, vector<128x128xf32> -> vector<128x128xf32>
    %c4_70 = arith.constant 4 : index
    %c0_71 = arith.constant 0 : index
    %c0_72 = arith.constant 0 : index
    %96 = vector.load %arg5[%c4_70, %c0_71, %c0_72] : memref<5x1x128xf32, #tpu.memory_space<vmem>>, vector<1x1x128xf32>
    %97 = vector.shape_cast %96 : vector<1x1x128xf32> to vector<1x128xf32>
    %98 = vector.broadcast %97 : vector<1x128xf32> to vector<128x128xf32>
    %99 = arith.addf %95, %98 : vector<128x128xf32>
    %cst_73 = arith.constant 0.000000e+00 : f32
    %100 = vector.broadcast %cst_73 : f32 to vector<128x128xf32>
    %101 = arith.maximumf %99, %100 : vector<128x128xf32>
    %102 = arith.truncf %101 : vector<128x128xf32> to vector<128x128xbf16>
    %c4_74 = arith.constant 4 : index
    %c0_75 = arith.constant 0 : index
    %c0_76 = arith.constant 0 : index
    %103 = vector.load %arg6[%c4_74, %c0_75, %c0_76] : memref<5x128x128xbf16, #tpu.memory_space<vmem>>, vector<1x128x128xbf16>
    %104 = vector.shape_cast %103 : vector<1x128x128xbf16> to vector<128x128xbf16>
    %cst_77 = arith.constant dense<0.000000e+00> : vector<128x128xf32>
    %105 = tpu.matmul %102, %104, %cst_77 {dimension_numbers = #tpu.dot_dimension_numbers<[1], [0], [0], [1], [0, 0, 1, 1], [], []>} : vector<128x128xbf16>, vector<128x128xbf16>, vector<128x128xf32> -> vector<128x128xf32>
    %106 = arith.addf %89, %105 : vector<128x128xf32>
    %c4_78 = arith.constant 4 : index
    %c0_79 = arith.constant 0 : index
    %c0_80 = arith.constant 0 : index
    %107 = vector.load %arg7[%c4_78, %c0_79, %c0_80] : memref<5x1x128xf32, #tpu.memory_space<vmem>>, vector<1x1x128xf32>
    %108 = vector.shape_cast %107 : vector<1x1x128xf32> to vector<1x128xf32>
    %109 = vector.broadcast %108 : vector<1x128xf32> to vector<128x128xf32>
    %110 = arith.addf %106, %109 : vector<128x128xf32>
    %cst_81 = arith.constant 0.000000e+00 : f32
    %111 = vector.broadcast %cst_81 : f32 to vector<128x128xf32>
    %112 = arith.maximumf %110, %111 : vector<128x128xf32>
    %113 = arith.truncf %112 : vector<128x128xf32> to vector<128x128xbf16>
    %c0_82 = arith.constant 0 : index
    %c0_83 = arith.constant 0 : index
    %114 = vector.load %arg8[%c0_82, %c0_83] : memref<128x128xbf16, #tpu.memory_space<vmem>>, vector<128x128xbf16>
    %cst_84 = arith.constant dense<0.000000e+00> : vector<128x128xf32>
    %115 = tpu.matmul %113, %114, %cst_84 {dimension_numbers = #tpu.dot_dimension_numbers<[1], [0], [0], [1], [0, 0, 1, 1], [], []>} : vector<128x128xbf16>, vector<128x128xbf16>, vector<128x128xf32> -> vector<128x128xf32>
    %c0_85 = arith.constant 0 : index
    %c0_86 = arith.constant 0 : index
    %116 = vector.load %arg9[%c0_85, %c0_86] : memref<1x128xf32, #tpu.memory_space<vmem>>, vector<1x128xf32>
    %117 = vector.broadcast %116 : vector<1x128xf32> to vector<128x128xf32>
    %118 = arith.addf %115, %117 : vector<128x128xf32>
    %c0_87 = arith.constant 0 : index
    %c0_88 = arith.constant 0 : index
    %119 = vector.load %arg10[%c0_87, %c0_88] : memref<128x128xf32, #tpu.memory_space<vmem>>, vector<128x128xf32>
    tpu.vector_store %arg10[%c0_87, %c0_88], %118 {strides = array<i32>} : memref<128x128xf32, #tpu.memory_space<vmem>>, vector<128x128xf32>,
    return
  }
  func.func @transform_0(%arg0: i32) -> (i32, i32) {
    %c0_i32 = arith.constant 0 : i32
    %c0_i32_0 = arith.constant 0 : i32
    return %arg0, %c0_i32 : i32, i32
  }
  func.func @transform_1(%arg0: i32) -> (i32, i32) {
    %c0_i32 = arith.constant 0 : i32
    %c0_i32_0 = arith.constant 0 : i32
    return %arg0, %c0_i32 : i32, i32
  }
  func.func @transform_2(%arg0: i32) -> (i32, i32) {
    %c0_i32 = arith.constant 0 : i32
    %c0_i32_0 = arith.constant 0 : i32
    %c0_i32_1 = arith.constant 0 : i32
    return %c0_i32, %c0_i32_0 : i32, i32
  }
  func.func @transform_3(%arg0: i32) -> (i32, i32, i32) {
    %c0_i32 = arith.constant 0 : i32
    %c0_i32_0 = arith.constant 0 : i32
    %c0_i32_1 = arith.constant 0 : i32
    %c0_i32_2 = arith.constant 0 : i32
    return %c0_i32, %c0_i32_0, %c0_i32_1 : i32, i32, i32
  }
  func.func @transform_4(%arg0: i32) -> (i32, i32, i32) {
    %c0_i32 = arith.constant 0 : i32
    %c0_i32_0 = arith.constant 0 : i32
    %c0_i32_1 = arith.constant 0 : i32
    %c0_i32_2 = arith.constant 0 : i32
    return %c0_i32, %c0_i32_0, %c0_i32_1 : i32, i32, i32
  }
  func.func @transform_5(%arg0: i32) -> (i32, i32, i32) {
    %c0_i32 = arith.constant 0 : i32
    %c0_i32_0 = arith.constant 0 : i32
    %c0_i32_1 = arith.constant 0 : i32
    %c0_i32_2 = arith.constant 0 : i32
    return %c0_i32, %c0_i32_0, %c0_i32_1 : i32, i32, i32
  }
  func.func @transform_6(%arg0: i32) -> (i32, i32, i32) {
    %c0_i32 = arith.constant 0 : i32
    %c0_i32_0 = arith.constant 0 : i32
    %c0_i32_1 = arith.constant 0 : i32
    %c0_i32_2 = arith.constant 0 : i32
    return %c0_i32, %c0_i32_0, %c0_i32_1 : i32, i32, i32
  }
  func.func @transform_7(%arg0: i32) -> (i32, i32) {
    %c0_i32 = arith.constant 0 : i32
    %c0_i32_0 = arith.constant 0 : i32
    %c0_i32_1 = arith.constant 0 : i32
    return %c0_i32, %c0_i32_0 : i32, i32
  }
  func.func @transform_8(%arg0: i32) -> (i32, i32) {
    %c0_i32 = arith.constant 0 : i32
    %c0_i32_0 = arith.constant 0 : i32
    %c0_i32_1 = arith.constant 0 : i32
    return %c0_i32, %c0_i32_0 : i32, i32
  }
  func.func @transform_9(%arg0: i32) -> (i32, i32) {
    %c0_i32 = arith.constant 0 : i32
    %c0_i32_0 = arith.constant 0 : i32
    return %arg0, %c0_i32 : i32, i32
  }
}

</mosaic_0001>

<llo_original>
// kernel: tpu_custom_call.1
$region0: #{tpu_custom_call.1}
  #allocation0 [shape = 'u32[]', space=smem, size = 0x4, offset = 0x4, fixed_abs, tag = 'smem constant byte address 0x4 - core index']
  #allocation1 [shape = 'u32[72,128]{1,0:T(1,128)}', space=vmem, size = 0x9000, scoped, tag = 'internal scratch']
  %s0 = inlined_call_operand.vmem [shape: f32[128,2], index: 0, kind: input, shape index: {}]
  %s1 = inlined_call_operand.vmem [shape: f32[128,128], index: 1, kind: input, shape index: {}]
  %s2 = inlined_call_operand.hbm [shape: bf16[2,128], index: 2, kind: input, shape index: {}]
  %s3 = inlined_call_operand.hbm [shape: bf16[5,128,128], index: 3, kind: input, shape index: {}]
  %s4 = inlined_call_operand.vmem [shape: f32[5,1,128], index: 4, kind: input, shape index: {}]
  %s5 = inlined_call_operand.hbm [shape: bf16[5,128,128], index: 5, kind: input, shape index: {}]
  %s6 = inlined_call_operand.hbm [shape: f32[5,1,128], index: 6, kind: input, shape index: {}]
  %s7 = inlined_call_operand.hbm [shape: bf16[128,128], index: 7, kind: input, shape index: {}]
  %s8 = inlined_call_operand.vmem [shape: f32[1,128], index: 8, kind: input, shape index: {}]
  %s9 = inlined_call_operand.hbm [shape: f32[128,128], index: 9, kind: output, shape index: {}]
  %s10 = sld [smem:[#allocation0]]
  $region66: #{tpu_custom_call.1} parent=0
    _
  %s12 = ssub.s32 1, %s10
  %s13 = scalar_select 0, %s12, %s10
  $region1: #{tpu_custom_call.1} parent=0
    #allocation2 [shape = 'u8[512]{0}', space=vmem, size = 0x400, scoped, tag = 'input window, operand 2, single buffered']
    #allocation3 [shape = 's32[1]{0}', space=sflag, size = 0x4, scoped, tag = 'scoped memory for tpu_custom_call.1']
    #allocation4 [shape = 's32[1]{0}', space=sflag, size = 0x4, scoped, tag = 'scoped memory for tpu_custom_call.1']
    #allocation5 [shape = 'u8[163840]{0}', space=vmem, size = 0x28000, scoped, tag = 'input window, operand 3, single buffered']
    #allocation6 [shape = 's32[1]{0}', space=sflag, size = 0x4, scoped, tag = 'scoped memory for tpu_custom_call.1']
    #allocation7 [shape = 'u8[163840]{0}', space=vmem, size = 0x28000, scoped, tag = 'input window, operand 5, single buffered']
    #allocation8 [shape = 'u8[2560]{0}', space=vmem, size = 0xc00, scoped, tag = 'input window, operand 6, single buffered']
    #allocation9 [shape = 's32[1]{0}', space=sflag, size = 0x4, scoped, tag = 'scoped memory for tpu_custom_call.1']
    #allocation10 [shape = 'u8[32768]{0}', space=vmem, size = 0x8000, scoped, tag = 'input window, operand 7, single buffered']
    #allocation11 [shape = 'u8[65536]{0}', space=vmem, size = 0x10000, scoped, tag = 'output window, operand 0, single buffered']
    %14 = vsyncpa [#allocation3], 0
    %15 = vsyncpa [#allocation6], 0
    %16 = vsyncpa [#allocation9], 0
    %17 = vsyncpa [#allocation4], 0
    // Predicated region
    $region2: #{tpu_custom_call.1} parent=1 // pred_check
      _
    $region3: #{tpu_custom_call.1} parent=1 // pred_check_branch
      %19 = sbr.rel (0) target = $region5
    $region4: #{tpu_custom_call.1} parent=1 // pred_region
      _
    $region5: #{tpu_custom_call.1} parent=1 // pred_fallthru
      _
    // Predicated region
    $region6: #{tpu_custom_call.1} parent=1 // pred_check
      _
    $region7: #{tpu_custom_call.1} parent=1 // pred_check_branch
      %21 = sbr.rel (0) target = $region9
    $region8: #{tpu_custom_call.1} parent=1 // pred_region
      _
    $region9: #{tpu_custom_call.1} parent=1 // pred_fallthru
      _
    // Predicated region
    $region10: #{tpu_custom_call.1} parent=1 // pred_check
      _
    $region11: #{tpu_custom_call.1} parent=1 // pred_check_branch
      %23 = sbr.rel (0) target = $region13
    $region12: #{tpu_custom_call.1} parent=1 // pred_region
      %25 = vsyncadd [#allocation3], 0
      %s27 = sshll.u32 %s2, 4
      %s28 = int_to_ptr.hbm [resolvable:$true] %s27
      %s29 = sshll.u32 [#allocation2], 4
      %s30 = int_to_ptr.vmem [resolvable:$true] %s29
      %32 = dma.hbm_to_vmem [thread:$0]  %s28, 16, %s30, [#allocation3]
    $region13: #{tpu_custom_call.1} parent=1 // pred_fallthru
      _
    // Predicated region
    $region14: #{tpu_custom_call.1} parent=1 // pred_check
      _
    $region15: #{tpu_custom_call.1} parent=1 // pred_check_branch
      %34 = sbr.rel (0) target = $region17
    $region16: #{tpu_custom_call.1} parent=1 // pred_region
      %36 = vsyncadd [#allocation6], 0
      %s37 = sshll.u32 %s3, 4
      %s38 = int_to_ptr.hbm [resolvable:$true] %s37
      %s39 = sshll.u32 [#allocation5], 4
      %s40 = int_to_ptr.vmem [resolvable:$true] %s39
      %45 = dma.hbm_to_vmem [thread:$0]  %s38, 5120, %s40, [#allocation6], 64, 64, 4
    $region17: #{tpu_custom_call.1} parent=1 // pred_fallthru
      _
    // Predicated region
    $region18: #{tpu_custom_call.1} parent=1 // pred_check
      _
    $region19: #{tpu_custom_call.1} parent=1 // pred_check_branch
      %47 = sbr.rel (0) target = $region21
    $region20: #{tpu_custom_call.1} parent=1 // pred_region
      _
    $region21: #{tpu_custom_call.1} parent=1 // pred_fallthru
      _
    // Predicated region
    $region22: #{tpu_custom_call.1} parent=1 // pred_check
      _
    $region23: #{tpu_custom_call.1} parent=1 // pred_check_branch
      %49 = sbr.rel (0) target = $region25
    $region24: #{tpu_custom_call.1} parent=1 // pred_region
      %51 = vsyncadd [#allocation6], 0
      %s52 = sshll.u32 %s5, 4
      %s53 = int_to_ptr.hbm [resolvable:$true] %s52
      %s54 = sshll.u32 [#allocation7], 4
      %s55 = int_to_ptr.vmem [resolvable:$true] %s54
      %60 = dma.hbm_to_vmem [thread:$0]  %s53, 5120, %s55, [#allocation6], 64, 64, 4
    $region25: #{tpu_custom_call.1} parent=1 // pred_fallthru
      _
    // Predicated region
    $region26: #{tpu_custom_call.1} parent=1 // pred_check
      _
    $region27: #{tpu_custom_call.1} parent=1 // pred_check_branch
      %62 = sbr.rel (0) target = $region29
    $region28: #{tpu_custom_call.1} parent=1 // pred_region
      %64 = vsyncadd [#allocation9], 0
      %s65 = sshll.u32 %s6, 4
      %s66 = int_to_ptr.hbm [resolvable:$true] %s65
      %s67 = sshll.u32 [#allocation8], 4
      %s68 = int_to_ptr.vmem [resolvable:$true] %s67
      %73 = dma.hbm_to_vmem [thread:$0]  %s66, 80, %s68, [#allocation9], 16, 16, 1
    $region29: #{tpu_custom_call.1} parent=1 // pred_fallthru
      _
    // Predicated region
    $region30: #{tpu_custom_call.1} parent=1 // pred_check
      _
    $region31: #{tpu_custom_call.1} parent=1 // pred_check_branch
      %75 = sbr.rel (0) target = $region33
    $region32: #{tpu_custom_call.1} parent=1 // pred_region
      %77 = vsyncadd [#allocation9], 0
      %s78 = sshll.u32 %s7, 4
      %s79 = int_to_ptr.hbm [resolvable:$true] %s78
      %s80 = sshll.u32 [#allocation10], 4
      %s81 = int_to_ptr.vmem [resolvable:$true] %s80
      %86 = dma.hbm_to_vmem [thread:$0]  %s79, 1024, %s81, [#allocation9], 64, 64, 4
    $region33: #{tpu_custom_call.1} parent=1 // pred_fallthru
      _
    // Predicated region
    $region34: #{tpu_custom_call.1} parent=1 // pred_check
      _
    $region35: #{tpu_custom_call.1} parent=1 // pred_check_branch
      %88 = sbr.rel (0) target = $region37
    $region36: #{tpu_custom_call.1} parent=1 // pred_region
      _
    $region37: #{tpu_custom_call.1} parent=1 // pred_fallthru
      _
    // Predicated region
    $region38: #{tpu_custom_call.1} parent=1 // pred_check
      _
    $region39: #{tpu_custom_call.1} parent=1 // pred_check_branch
      %90 = sbr.rel (0) target = $region41
    $region40: #{tpu_custom_call.1} parent=1 // pred_region
      %92 = dma.done [#allocation3], 16
    $region41: #{tpu_custom_call.1} parent=1 // pred_fallthru
      _
    // Predicated region
    $region42: #{tpu_custom_call.1} parent=1 // pred_check
      _
    $region43: #{tpu_custom_call.1} parent=1 // pred_check_branch
      %94 = sbr.rel (0) target = $region45
    $region44: #{tpu_custom_call.1} parent=1 // pred_region
      %96 = dma.done [#allocation6], 5120
    $region45: #{tpu_custom_call.1} parent=1 // pred_fallthru
      _
    // Predicated region
    $region46: #{tpu_custom_call.1} parent=1 // pred_check
      _
    $region47: #{tpu_custom_call.1} parent=1 // pred_check_branch
      %98 = sbr.rel (0) target = $region49
    $region48: #{tpu_custom_call.1} parent=1 // pred_region
      %100 = dma.done [#allocation6], 5120
    $region49: #{tpu_custom_call.1} parent=1 // pred_fallthru
      _
    // Predicated region
    $region50: #{tpu_custom_call.1} parent=1 // pred_check
      _
    $region51: #{tpu_custom_call.1} parent=1 // pred_check_branch
      %102 = sbr.rel (0) target = $region53
    $region52: #{tpu_custom_call.1} parent=1 // pred_region
      %104 = dma.done [#allocation9], 80
    $region53: #{tpu_custom_call.1} parent=1 // pred_fallthru
      _
    // Predicated region
    $region54: #{tpu_custom_call.1} parent=1 // pred_check
      _
    $region55: #{tpu_custom_call.1} parent=1 // pred_check_branch
      %106 = sbr.rel (0) target = $region57
    $region56: #{tpu_custom_call.1} parent=1 // pred_region
      %108 = dma.done [#allocation9], 1024
    $region57: #{tpu_custom_call.1} parent=1 // pred_fallthru
      _
    %v110 = vld [vmem:[%s0] sm:$0xff]
    %v111 = vld [vmem:[%s0 + $0x8] sm:$0xff]
    %v112 = vld [vmem:[%s0 + $0x10] sm:$0xff]
    %v113 = vld [vmem:[%s0 + $0x18] sm:$0xff]
    %v114 = vld [vmem:[%s0 + $0x20] sm:$0xff]
    %v115 = vld [vmem:[%s0 + $0x28] sm:$0xff]
    %v116 = vld [vmem:[%s0 + $0x30] sm:$0xff]
    %v117 = vld [vmem:[%s0 + $0x38] sm:$0xff]
    %v118 = vld [vmem:[%s0 + $0x40] sm:$0xff]
    %v119 = vld [vmem:[%s0 + $0x48] sm:$0xff]
    %v120 = vld [vmem:[%s0 + $0x50] sm:$0xff]
    %v121 = vld [vmem:[%s0 + $0x58] sm:$0xff]
    %v122 = vld [vmem:[%s0 + $0x60] sm:$0xff]
    %v123 = vld [vmem:[%s0 + $0x68] sm:$0xff]
    %v124 = vld [vmem:[%s0 + $0x70] sm:$0xff]
    %v125 = vld [vmem:[%s0 + $0x78] sm:$0xff]
    %v126 = vpack.c.bf16 %v111, %v110
    %v127 = vpack.c.bf16 %v113, %v112
    %v128 = vpack.c.bf16 %v115, %v114
    %v129 = vpack.c.bf16 %v117, %v116
    %v130 = vpack.c.bf16 %v119, %v118
    %v131 = vpack.c.bf16 %v121, %v120
    %v132 = vpack.c.bf16 %v123, %v122
    %v133 = vpack.c.bf16 %v125, %v124
    %v134 = vld [vmem:[#allocation2] sm:$0x1]
    %v135 = vld [vmem:[%s1] sm:$0xff]
    %v136 = vld [vmem:[%s1 + $0x8] sm:$0xff]
    %v137 = vld [vmem:[%s1 + $0x10] sm:$0xff]
    %v138 = vld [vmem:[%s1 + $0x18] sm:$0xff]
    %v139 = vld [vmem:[%s1 + $0x20] sm:$0xff]
    %v140 = vld [vmem:[%s1 + $0x28] sm:$0xff]
    %v141 = vld [vmem:[%s1 + $0x30] sm:$0xff]
    %v142 = vld [vmem:[%s1 + $0x38] sm:$0xff]
    %v143 = vld [vmem:[%s1 + $0x40] sm:$0xff]
    %v144 = vld [vmem:[%s1 + $0x48] sm:$0xff]
    %v145 = vld [vmem:[%s1 + $0x50] sm:$0xff]
    %v146 = vld [vmem:[%s1 + $0x58] sm:$0xff]
    %v147 = vld [vmem:[%s1 + $0x60] sm:$0xff]
    %v148 = vld [vmem:[%s1 + $0x68] sm:$0xff]
    %v149 = vld [vmem:[%s1 + $0x70] sm:$0xff]
    %v150 = vld [vmem:[%s1 + $0x78] sm:$0xff]
    %vm151 = vcmask 15360
    %v153 = vsel %vm151, %v126, 0
    %v156 = vsel %vm151, %v127, 0
    %v159 = vsel %vm151, %v128, 0
    %v162 = vsel %vm151, %v129, 0
    %v165 = vsel %vm151, %v130, 0
    %v168 = vsel %vm151, %v131, 0
    %v171 = vsel %vm151, %v132, 0
    %v174 = vsel %vm151, %v133, 0
    %vm176 = vcmask 1040384
    %v178 = vsel %vm176, %v134, 0
    %180 = vmatpush.bf16.msra.mxu0 0
    %181 = vmatpush.bf16.msra.mxu0 0
    %182 = vmatpush.bf16.msra.mxu0 0
    %183 = vmatpush.bf16.msra.mxu0 0
    %184 = vmatpush.bf16.msra.mxu0 0
    %185 = vmatpush.bf16.msra.mxu0 0
    %186 = vmatpush.bf16.msra.mxu0 0
    %187 = vmatpush.bf16.msra.mxu0 %v178
    %188 = vmatmul.bf16.gmra.mxu0 %v153
    %v189 = vpop.f32.mrf.mxu0
    %v190 = vadd.f32 %v135, %v189
    %v191 = vpop.f32.mrf.mxu0
    %v192 = vadd.f32 %v136, %v191
    %193 = vmatmul.bf16.gmra.mxu0 %v156
    %v194 = vpop.f32.mrf.mxu0
    %v195 = vadd.f32 %v137, %v194
    %v196 = vpop.f32.mrf.mxu0
    %v197 = vadd.f32 %v138, %v196
    %198 = vmatmul.bf16.gmra.mxu0 %v159
    %v199 = vpop.f32.mrf.mxu0
    %v200 = vadd.f32 %v139, %v199
    %v201 = vpop.f32.mrf.mxu0
    %v202 = vadd.f32 %v140, %v201
    %203 = vmatmul.bf16.gmra.mxu0 %v162
    %v204 = vpop.f32.mrf.mxu0
    %v205 = vadd.f32 %v141, %v204
    %v206 = vpop.f32.mrf.mxu0
    %v207 = vadd.f32 %v142, %v206
    %208 = vmatmul.bf16.gmra.mxu0 %v165
    %v209 = vpop.f32.mrf.mxu0
    %v210 = vadd.f32 %v143, %v209
    %v211 = vpop.f32.mrf.mxu0
    %v212 = vadd.f32 %v144, %v211
    %213 = vmatmul.bf16.gmra.mxu0 %v168
    %v214 = vpop.f32.mrf.mxu0
    %v215 = vadd.f32 %v145, %v214
    %v216 = vpop.f32.mrf.mxu0
    %v217 = vadd.f32 %v146, %v216
    %218 = vmatmul.bf16.gmra.mxu0 %v171
    %v219 = vpop.f32.mrf.mxu0
    %v220 = vadd.f32 %v147, %v219
    %v221 = vpop.f32.mrf.mxu0
    %v222 = vadd.f32 %v148, %v221
    %223 = vmatmul.bf16.gmra.mxu0 %v174
    %v224 = vpop.f32.mrf.mxu0
    %v225 = vadd.f32 %v149, %v224
    %v226 = vpop.f32.mrf.mxu0
    %v227 = vadd.f32 %v150, %v226
    %228 = vdwg.mxu0
    %v229 = vmax.f32 %v190, 0.0
    %v230 = vmax.f32 %v192, 0.0
    %v231 = vmax.f32 %v195, 0.0
    %v232 = vmax.f32 %v197, 0.0
    %v233 = vmax.f32 %v200, 0.0
    %v234 = vmax.f32 %v202, 0.0
    %v235 = vmax.f32 %v205, 0.0
    %v236 = vmax.f32 %v207, 0.0
    %v237 = vmax.f32 %v210, 0.0
    %v238 = vmax.f32 %v212, 0.0
    %v239 = vmax.f32 %v215, 0.0
    %v240 = vmax.f32 %v217, 0.0
    %v241 = vmax.f32 %v220, 0.0
    %v242 = vmax.f32 %v222, 0.0
    %v243 = vmax.f32 %v225, 0.0
    %v244 = vmax.f32 %v227, 0.0
    %v245 = vpack.c.bf16 %v230, %v229
    %v246 = vpack.c.bf16 %v232, %v231
    %v247 = vpack.c.bf16 %v234, %v233
    %v248 = vpack.c.bf16 %v236, %v235
    %v249 = vpack.c.bf16 %v238, %v237
    %v250 = vpack.c.bf16 %v240, %v239
    %v251 = vpack.c.bf16 %v242, %v241
    %v252 = vpack.c.bf16 %v244, %v243
    %v253 = vld [vmem:[#allocation5] sm:$0xf]
    %v254 = vld [vmem:[#allocation5 + $0x4] sm:$0xf]
    %v255 = vld [vmem:[#allocation5 + $0x8] sm:$0xf]
    %v256 = vld [vmem:[#allocation5 + $0xc] sm:$0xf]
    %v257 = vld [vmem:[#allocation5 + $0x10] sm:$0xf]
    %v258 = vld [vmem:[#allocation5 + $0x14] sm:$0xf]
    %v259 = vld [vmem:[#allocation5 + $0x18] sm:$0xf]
    %v260 = vld [vmem:[#allocation5 + $0x1c] sm:$0xf]
    %v261 = vld [vmem:[#allocation5 + $0x20] sm:$0xf]
    %v262 = vld [vmem:[#allocation5 + $0x24] sm:$0xf]
    %v263 = vld [vmem:[#allocation5 + $0x28] sm:$0xf]
    %v264 = vld [vmem:[#allocation5 + $0x2c] sm:$0xf]
    %v265 = vld [vmem:[#allocation5 + $0x30] sm:$0xf]
    %v266 = vld [vmem:[#allocation5 + $0x34] sm:$0xf]
    %v267 = vld [vmem:[#allocation5 + $0x38] sm:$0xf]
    %v268 = vld [vmem:[#allocation5 + $0x3c] sm:$0xf]
    %v269 = vld [vmem:[%s4] sm:$0x1]
    %v271 = vperm.slane %v269, 0
    %v289 = vunpack.c.l.b16 %v253
    %v290 = vunpack.c.l.b16 %v254
    %v291 = vunpack.c.l.b16 %v255
    %v292 = vunpack.c.l.b16 %v256
    %v293 = vunpack.c.l.b16 %v257
    %v294 = vunpack.c.l.b16 %v258
    %v295 = vunpack.c.l.b16 %v259
    %v296 = vunpack.c.l.b16 %v260
    %v297 = vunpack.c.l.b16 %v261
    %v298 = vunpack.c.l.b16 %v262
    %v299 = vunpack.c.l.b16 %v263
    %v300 = vunpack.c.l.b16 %v264
    %v301 = vunpack.c.l.b16 %v265
    %v302 = vunpack.c.l.b16 %v266
    %v303 = vunpack.c.l.b16 %v267
    %v304 = vunpack.c.l.b16 %v268
    %v305 = vpack.c.b16 %v290, %v289
    %v306 = vpack.c.b16 %v292, %v291
    %v307 = vpack.c.b16 %v294, %v293
    %v308 = vpack.c.b16 %v296, %v295
    %v309 = vpack.c.b16 %v298, %v297
    %v310 = vpack.c.b16 %v300, %v299
    %v311 = vpack.c.b16 %v302, %v301
    %v312 = vpack.c.b16 %v304, %v303
    %321 = vmatpush.bf16.msra.mxu0 %v312
    %322 = vmatpush.bf16.msra.mxu0 %v311
    %323 = vmatpush.bf16.msra.mxu0 %v310
    %324 = vmatpush.bf16.msra.mxu0 %v309
    %325 = vmatpush.bf16.msra.mxu0 %v308
    %326 = vmatpush.bf16.msra.mxu0 %v307
    %327 = vmatpush.bf16.msra.mxu0 %v306
    %328 = vmatpush.bf16.msra.mxu0 %v305
    %329 = vmatmul.bf16.gmra.mxu0 %v245
    %v330 = vpop.f32.mrf.mxu0
    %v331 = vadd.f32 %v271, %v330
    %v332 = vpop.f32.mrf.mxu0
    %v333 = vadd.f32 %v271, %v332
    %334 = vmatmul.bf16.gmra.mxu0 %v246
    %v335 = vpop.f32.mrf.mxu0
    %v336 = vadd.f32 %v271, %v335
    %v337 = vpop.f32.mrf.mxu0
    %v338 = vadd.f32 %v271, %v337
    %339 = vmatmul.bf16.gmra.mxu0 %v247
    %v340 = vpop.f32.mrf.mxu0
    %v341 = vadd.f32 %v271, %v340
    %v342 = vpop.f32.mrf.mxu0
    %v343 = vadd.f32 %v271, %v342
    %344 = vmatmul.bf16.gmra.mxu0 %v248
    %v345 = vpop.f32.mrf.mxu0
    %v346 = vadd.f32 %v271, %v345
    %v347 = vpop.f32.mrf.mxu0
    %v348 = vadd.f32 %v271, %v347
    %349 = vmatmul.bf16.gmra.mxu0 %v249
    %v350 = vpop.f32.mrf.mxu0
    %v351 = vadd.f32 %v271, %v350
    %v352 = vpop.f32.mrf.mxu0
    %v353 = vadd.f32 %v271, %v352
    %354 = vmatmul.bf16.gmra.mxu0 %v250
    %v355 = vpop.f32.mrf.mxu0
    %v356 = vadd.f32 %v271, %v355
    %v357 = vpop.f32.mrf.mxu0
    %v358 = vadd.f32 %v271, %v357
    %359 = vmatmul.bf16.gmra.mxu0 %v251
    %v360 = vpop.f32.mrf.mxu0
    %v361 = vadd.f32 %v271, %v360
    %v362 = vpop.f32.mrf.mxu0
    %v363 = vadd.f32 %v271, %v362
    %364 = vmatmul.bf16.gmra.mxu0 %v252
    %v365 = vpop.f32.mrf.mxu0
    %v366 = vadd.f32 %v271, %v365
    %v367 = vpop.f32.mrf.mxu0
    %v368 = vadd.f32 %v271, %v367
    %369 = vdwg.mxu0
    %v370 = vmax.f32 %v331, 0.0
    %v371 = vmax.f32 %v333, 0.0
    %v372 = vmax.f32 %v336, 0.0
    %v373 = vmax.f32 %v338, 0.0
    %v374 = vmax.f32 %v341, 0.0
    %v375 = vmax.f32 %v343, 0.0
    %v376 = vmax.f32 %v346, 0.0
    %v377 = vmax.f32 %v348, 0.0
    %v378 = vmax.f32 %v351, 0.0
    %v379 = vmax.f32 %v353, 0.0
    %v380 = vmax.f32 %v356, 0.0
    %v381 = vmax.f32 %v358, 0.0
    %v382 = vmax.f32 %v361, 0.0
    %v383 = vmax.f32 %v363, 0.0
    %v384 = vmax.f32 %v366, 0.0
    %v385 = vmax.f32 %v368, 0.0
    %v386 = vpack.c.bf16 %v371, %v370
    %v387 = vpack.c.bf16 %v373, %v372
    %v388 = vpack.c.bf16 %v375, %v374
    %v389 = vpack.c.bf16 %v377, %v376
    %v390 = vpack.c.bf16 %v379, %v378
    %v391 = vpack.c.bf16 %v381, %v380
    %v392 = vpack.c.bf16 %v383, %v382
    %v393 = vpack.c.bf16 %v385, %v384
    %v394 = vld [vmem:[#allocation7] sm:$0xf]
    %v395 = vld [vmem:[#allocation7 + $0x4] sm:$0xf]
    %v396 = vld [vmem:[#allocation7 + $0x8] sm:$0xf]
    %v397 = vld [vmem:[#allocation7 + $0xc] sm:$0xf]
    %v398 = vld [vmem:[#allocation7 + $0x10] sm:$0xf]
    %v399 = vld [vmem:[#allocation7 + $0x14] sm:$0xf]
    %v400 = vld [vmem:[#allocation7 + $0x18] sm:$0xf]
    %v401 = vld [vmem:[#allocation7 + $0x1c] sm:$0xf]
    %v402 = vld [vmem:[#allocation7 + $0x20] sm:$0xf]
    %v403 = vld [vmem:[#allocation7 + $0x24] sm:$0xf]
    %v404 = vld [vmem:[#allocation7 + $0x28] sm:$0xf]
    %v405 = vld [vmem:[#allocation7 + $0x2c] sm:$0xf]
    %v406 = vld [vmem:[#allocation7 + $0x30] sm:$0xf]
    %v407 = vld [vmem:[#allocation7 + $0x34] sm:$0xf]
    %v408 = vld [vmem:[#allocation7 + $0x38] sm:$0xf]
    %v409 = vld [vmem:[#allocation7 + $0x3c] sm:$0xf]
    %v426 = vunpack.c.l.b16 %v394
    %v427 = vunpack.c.l.b16 %v395
    %v428 = vunpack.c.l.b16 %v396
    %v429 = vunpack.c.l.b16 %v397
    %v430 = vunpack.c.l.b16 %v398
    %v431 = vunpack.c.l.b16 %v399
    %v432 = vunpack.c.l.b16 %v400
    %v433 = vunpack.c.l.b16 %v401
    %v434 = vunpack.c.l.b16 %v402
    %v435 = vunpack.c.l.b16 %v403
    %v436 = vunpack.c.l.b16 %v404
    %v437 = vunpack.c.l.b16 %v405
    %v438 = vunpack.c.l.b16 %v406
    %v439 = vunpack.c.l.b16 %v407
    %v440 = vunpack.c.l.b16 %v408
    %v441 = vunpack.c.l.b16 %v409
    %v442 = vpack.c.b16 %v427, %v426
    %v443 = vpack.c.b16 %v429, %v428
    %v444 = vpack.c.b16 %v431, %v430
    %v445 = vpack.c.b16 %v433, %v432
    %v446 = vpack.c.b16 %v435, %v434
    %v447 = vpack.c.b16 %v437, %v436
    %v448 = vpack.c.b16 %v439, %v438
    %v449 = vpack.c.b16 %v441, %v440
    %458 = vmatpush.bf16.msra.mxu0 %v449
    %459 = vmatpush.bf16.msra.mxu0 %v448
    %460 = vmatpush.bf16.msra.mxu0 %v447
    %461 = vmatpush.bf16.msra.mxu0 %v446
    %462 = vmatpush.bf16.msra.mxu0 %v445
    %463 = vmatpush.bf16.msra.mxu0 %v444
    %464 = vmatpush.bf16.msra.mxu0 %v443
    %465 = vmatpush.bf16.msra.mxu0 %v442
    %466 = vmatmul.bf16.gmra.mxu0 %v386
    %v467 = vpop.f32.mrf.mxu0
    %v468 = vadd.f32 0.0, %v467
    %v469 = vpop.f32.mrf.mxu0
    %v470 = vadd.f32 0.0, %v469
    %471 = vmatmul.bf16.gmra.mxu0 %v387
    %v472 = vpop.f32.mrf.mxu0
    %v473 = vadd.f32 0.0, %v472
    %v474 = vpop.f32.mrf.mxu0
    %v475 = vadd.f32 0.0, %v474
    %476 = vmatmul.bf16.gmra.mxu0 %v388
    %v477 = vpop.f32.mrf.mxu0
    %v478 = vadd.f32 0.0, %v477
    %v479 = vpop.f32.mrf.mxu0
    %v480 = vadd.f32 0.0, %v479
    %481 = vmatmul.bf16.gmra.mxu0 %v389
    %v482 = vpop.f32.mrf.mxu0
    %v483 = vadd.f32 0.0, %v482
    %v484 = vpop.f32.mrf.mxu0
    %v485 = vadd.f32 0.0, %v484
    %486 = vmatmul.bf16.gmra.mxu0 %v390
    %v487 = vpop.f32.mrf.mxu0
    %v488 = vadd.f32 0.0, %v487
    %v489 = vpop.f32.mrf.mxu0
    %v490 = vadd.f32 0.0, %v489
    %491 = vmatmul.bf16.gmra.mxu0 %v391
    %v492 = vpop.f32.mrf.mxu0
    %v493 = vadd.f32 0.0, %v492
    %v494 = vpop.f32.mrf.mxu0
    %v495 = vadd.f32 0.0, %v494
    %496 = vmatmul.bf16.gmra.mxu0 %v392
    %v497 = vpop.f32.mrf.mxu0
    %v498 = vadd.f32 0.0, %v497
    %v499 = vpop.f32.mrf.mxu0
    %v500 = vadd.f32 0.0, %v499
    %501 = vmatmul.bf16.gmra.mxu0 %v393
    %v502 = vpop.f32.mrf.mxu0
    %v503 = vadd.f32 0.0, %v502
    %v504 = vpop.f32.mrf.mxu0
    %v505 = vadd.f32 0.0, %v504
    %506 = vdwg.mxu0
    %v507 = vadd.f32 %v190, %v468
    %v508 = vadd.f32 %v192, %v470
    %v509 = vadd.f32 %v195, %v473
    %v510 = vadd.f32 %v197, %v475
    %v511 = vadd.f32 %v200, %v478
    %v512 = vadd.f32 %v202, %v480
    %v513 = vadd.f32 %v205, %v483
    %v514 = vadd.f32 %v207, %v485
    %v515 = vadd.f32 %v210, %v488
    %v516 = vadd.f32 %v212, %v490
    %v517 = vadd.f32 %v215, %v493
    %v518 = vadd.f32 %v217, %v495
    %v519 = vadd.f32 %v220, %v498
    %v520 = vadd.f32 %v222, %v500
    %v521 = vadd.f32 %v225, %v503
    %v522 = vadd.f32 %v227, %v505
    %v523 = vld [vmem:[#allocation8] sm:$0x1]
    %v525 = vperm.slane %v523, 0
    %v527 = vadd.f32 %v507, %v525
    %v528 = vadd.f32 %v508, %v525
    %v529 = vadd.f32 %v509, %v525
    %v530 = vadd.f32 %v510, %v525
    %v531 = vadd.f32 %v511, %v525
    %v532 = vadd.f32 %v512, %v525
    %v533 = vadd.f32 %v513, %v525
    %v534 = vadd.f32 %v514, %v525
    %v535 = vadd.f32 %v515, %v525
    %v536 = vadd.f32 %v516, %v525
    %v537 = vadd.f32 %v517, %v525
    %v538 = vadd.f32 %v518, %v525
    %v539 = vadd.f32 %v519, %v525
    %v540 = vadd.f32 %v520, %v525
    %v541 = vadd.f32 %v521, %v525
    %v542 = vadd.f32 %v522, %v525
    %v543 = vmax.f32 %v527, 0.0
    %v544 = vmax.f32 %v528, 0.0
    %v545 = vmax.f32 %v529, 0.0
    %v546 = vmax.f32 %v530, 0.0
    %v547 = vmax.f32 %v531, 0.0
    %v548 = vmax.f32 %v532, 0.0
    %v549 = vmax.f32 %v533, 0.0
    %v550 = vmax.f32 %v534, 0.0
    %v551 = vmax.f32 %v535, 0.0
    %v552 = vmax.f32 %v536, 0.0
    %v553 = vmax.f32 %v537, 0.0
    %v554 = vmax.f32 %v538, 0.0
    %v555 = vmax.f32 %v539, 0.0
    %v556 = vmax.f32 %v540, 0.0
    %v557 = vmax.f32 %v541, 0.0
    %v558 = vmax.f32 %v542, 0.0
    %v559 = vpack.c.bf16 %v544, %v543
    %v560 = vpack.c.bf16 %v546, %v545
    %v561 = vpack.c.bf16 %v548, %v547
    %v562 = vpack.c.bf16 %v550, %v549
    %v563 = vpack.c.bf16 %v552, %v551
    %v564 = vpack.c.bf16 %v554, %v553
    %v565 = vpack.c.bf16 %v556, %v555
    %v566 = vpack.c.bf16 %v558, %v557
    %s567 = scalar_lea.vmem [#allocation5], 64
    %v568 = vld [vmem:[%s567] sm:$0xf]
    %v569 = vld [vmem:[%s567 + $0x4] sm:$0xf]
    %v570 = vld [vmem:[%s567 + $0x8] sm:$0xf]
    %v571 = vld [vmem:[%s567 + $0xc] sm:$0xf]
    %v572 = vld [vmem:[%s567 + $0x10] sm:$0xf]
    %v573 = vld [vmem:[%s567 + $0x14] sm:$0xf]
    %v574 = vld [vmem:[%s567 + $0x18] sm:$0xf]
    %v575 = vld [vmem:[%s567 + $0x1c] sm:$0xf]
    %v576 = vld [vmem:[%s567 + $0x20] sm:$0xf]
    %v577 = vld [vmem:[%s567 + $0x24] sm:$0xf]
    %v578 = vld [vmem:[%s567 + $0x28] sm:$0xf]
    %v579 = vld [vmem:[%s567 + $0x2c] sm:$0xf]
    %v580 = vld [vmem:[%s567 + $0x30] sm:$0xf]
    %v581 = vld [vmem:[%s567 + $0x34] sm:$0xf]
    %v582 = vld [vmem:[%s567 + $0x38] sm:$0xf]
    %v583 = vld [vmem:[%s567 + $0x3c] sm:$0xf]
    %s584 = scalar_lea.vmem %s4, 1
    %v585 = vld [vmem:[%s584] sm:$0x1]
    %v587 = vperm.slane %v585, 0
    %v605 = vunpack.c.l.b16 %v568
    %v606 = vunpack.c.l.b16 %v569
    %v607 = vunpack.c.l.b16 %v570
    %v608 = vunpack.c.l.b16 %v571
    %v609 = vunpack.c.l.b16 %v572
    %v610 = vunpack.c.l.b16 %v573
    %v611 = vunpack.c.l.b16 %v574
    %v612 = vunpack.c.l.b16 %v575
    %v613 = vunpack.c.l.b16 %v576
    %v614 = vunpack.c.l.b16 %v577
    %v615 = vunpack.c.l.b16 %v578
    %v616 = vunpack.c.l.b16 %v579
    %v617 = vunpack.c.l.b16 %v580
    %v618 = vunpack.c.l.b16 %v581
    %v619 = vunpack.c.l.b16 %v582
    %v620 = vunpack.c.l.b16 %v583
    %v621 = vpack.c.b16 %v606, %v605
    %v622 = vpack.c.b16 %v608, %v607
    %v623 = vpack.c.b16 %v610, %v609
    %v624 = vpack.c.b16 %v612, %v611
    %v625 = vpack.c.b16 %v614, %v613
    %v626 = vpack.c.b16 %v616, %v615
    %v627 = vpack.c.b16 %v618, %v617
    %v628 = vpack.c.b16 %v620, %v619
    %637 = vmatpush.bf16.msra.mxu0 %v628
    %638 = vmatpush.bf16.msra.mxu0 %v627
    %639 = vmatpush.bf16.msra.mxu0 %v626
    %640 = vmatpush.bf16.msra.mxu0 %v625
    %641 = vmatpush.bf16.msra.mxu0 %v624
    %642 = vmatpush.bf16.msra.mxu0 %v623
    %643 = vmatpush.bf16.msra.mxu0 %v622
    %644 = vmatpush.bf16.msra.mxu0 %v621
    %645 = vmatmul.bf16.gmra.mxu0 %v559
    %v646 = vpop.f32.mrf.mxu0
    %v647 = vadd.f32 %v587, %v646
    %v648 = vpop.f32.mrf.mxu0
    %v649 = vadd.f32 %v587, %v648
    %650 = vmatmul.bf16.gmra.mxu0 %v560
    %v651 = vpop.f32.mrf.mxu0
    %v652 = vadd.f32 %v587, %v651
    %v653 = vpop.f32.mrf.mxu0
    %v654 = vadd.f32 %v587, %v653
    %655 = vmatmul.bf16.gmra.mxu0 %v561
    %v656 = vpop.f32.mrf.mxu0
    %v657 = vadd.f32 %v587, %v656
    %v658 = vpop.f32.mrf.mxu0
    %v659 = vadd.f32 %v587, %v658
    %660 = vmatmul.bf16.gmra.mxu0 %v562
    %v661 = vpop.f32.mrf.mxu0
    %v662 = vadd.f32 %v587, %v661
    %v663 = vpop.f32.mrf.mxu0
    %v664 = vadd.f32 %v587, %v663
    %665 = vmatmul.bf16.gmra.mxu0 %v563
    %v666 = vpop.f32.mrf.mxu0
    %v667 = vadd.f32 %v587, %v666
    %v668 = vpop.f32.mrf.mxu0
    %v669 = vadd.f32 %v587, %v668
    %670 = vmatmul.bf16.gmra.mxu0 %v564
    %v671 = vpop.f32.mrf.mxu0
    %v672 = vadd.f32 %v587, %v671
    %v673 = vpop.f32.mrf.mxu0
    %v674 = vadd.f32 %v587, %v673
    %675 = vmatmul.bf16.gmra.mxu0 %v565
    %v676 = vpop.f32.mrf.mxu0
    %v677 = vadd.f32 %v587, %v676
    %v678 = vpop.f32.mrf.mxu0
    %v679 = vadd.f32 %v587, %v678
    %680 = vmatmul.bf16.gmra.mxu0 %v566
    %v681 = vpop.f32.mrf.mxu0
    %v682 = vadd.f32 %v587, %v681
    %v683 = vpop.f32.mrf.mxu0
    %v684 = vadd.f32 %v587, %v683
    %685 = vdwg.mxu0
    %v686 = vmax.f32 %v647, 0.0
    %v687 = vmax.f32 %v649, 0.0
    %v688 = vmax.f32 %v652, 0.0
    %v689 = vmax.f32 %v654, 0.0
    %v690 = vmax.f32 %v657, 0.0
    %v691 = vmax.f32 %v659, 0.0
    %v692 = vmax.f32 %v662, 0.0
    %v693 = vmax.f32 %v664, 0.0
    %v694 = vmax.f32 %v667, 0.0
    %v695 = vmax.f32 %v669, 0.0
    %v696 = vmax.f32 %v672, 0.0
    %v697 = vmax.f32 %v674, 0.0
    %v698 = vmax.f32 %v677, 0.0
    %v699 = vmax.f32 %v679, 0.0
    %v700 = vmax.f32 %v682, 0.0
    %v701 = vmax.f32 %v684, 0.0
    %v702 = vpack.c.bf16 %v687, %v686
    %v703 = vpack.c.bf16 %v689, %v688
    %v704 = vpack.c.bf16 %v691, %v690
    %v705 = vpack.c.bf16 %v693, %v692
    %v706 = vpack.c.bf16 %v695, %v694
    %v707 = vpack.c.bf16 %v697, %v696
    %v708 = vpack.c.bf16 %v699, %v698
    %v709 = vpack.c.bf16 %v701, %v700
    %s710 = scalar_lea.vmem [#allocation7], 64
    %v711 = vld [vmem:[%s710] sm:$0xf]
    %v712 = vld [vmem:[%s710 + $0x4] sm:$0xf]
    %v713 = vld [vmem:[%s710 + $0x8] sm:$0xf]
    %v714 = vld [vmem:[%s710 + $0xc] sm:$0xf]
    %v715 = vld [vmem:[%s710 + $0x10] sm:$0xf]
    %v716 = vld [vmem:[%s710 + $0x14] sm:$0xf]
    %v717 = vld [vmem:[%s710 + $0x18] sm:$0xf]
    %v718 = vld [vmem:[%s710 + $0x1c] sm:$0xf]
    %v719 = vld [vmem:[%s710 + $0x20] sm:$0xf]
    %v720 = vld [vmem:[%s710 + $0x24] sm:$0xf]
    %v721 = vld [vmem:[%s710 + $0x28] sm:$0xf]
    %v722 = vld [vmem:[%s710 + $0x2c] sm:$0xf]
    %v723 = vld [vmem:[%s710 + $0x30] sm:$0xf]
    %v724 = vld [vmem:[%s710 + $0x34] sm:$0xf]
    %v725 = vld [vmem:[%s710 + $0x38] sm:$0xf]
    %v726 = vld [vmem:[%s710 + $0x3c] sm:$0xf]
    %v743 = vunpack.c.l.b16 %v711
    %v744 = vunpack.c.l.b16 %v712
    %v745 = vunpack.c.l.b16 %v713
    %v746 = vunpack.c.l.b16 %v714
    %v747 = vunpack.c.l.b16 %v715
    %v748 = vunpack.c.l.b16 %v716
    %v749 = vunpack.c.l.b16 %v717
    %v750 = vunpack.c.l.b16 %v718
    %v751 = vunpack.c.l.b16 %v719
    %v752 = vunpack.c.l.b16 %v720
    %v753 = vunpack.c.l.b16 %v721
    %v754 = vunpack.c.l.b16 %v722
    %v755 = vunpack.c.l.b16 %v723
    %v756 = vunpack.c.l.b16 %v724
    %v757 = vunpack.c.l.b16 %v725
    %v758 = vunpack.c.l.b16 %v726
    %v759 = vpack.c.b16 %v744, %v743
    %v760 = vpack.c.b16 %v746, %v745
    %v761 = vpack.c.b16 %v748, %v747
    %v762 = vpack.c.b16 %v750, %v749
    %v763 = vpack.c.b16 %v752, %v751
    %v764 = vpack.c.b16 %v754, %v753
    %v765 = vpack.c.b16 %v756, %v755
    %v766 = vpack.c.b16 %v758, %v757
    %775 = vmatpush.bf16.msra.mxu0 %v766
    %776 = vmatpush.bf16.msra.mxu0 %v765
    %777 = vmatpush.bf16.msra.mxu0 %v764
    %778 = vmatpush.bf16.msra.mxu0 %v763
    %779 = vmatpush.bf16.msra.mxu0 %v762
    %780 = vmatpush.bf16.msra.mxu0 %v761
    %781 = vmatpush.bf16.msra.mxu0 %v760
    %782 = vmatpush.bf16.msra.mxu0 %v759
    %783 = vmatmul.bf16.gmra.mxu0 %v702
    %v784 = vpop.f32.mrf.mxu0
    %v785 = vadd.f32 0.0, %v784
    %v786 = vpop.f32.mrf.mxu0
    %v787 = vadd.f32 0.0, %v786
    %788 = vmatmul.bf16.gmra.mxu0 %v703
    %v789 = vpop.f32.mrf.mxu0
    %v790 = vadd.f32 0.0, %v789
    %v791 = vpop.f32.mrf.mxu0
    %v792 = vadd.f32 0.0, %v791
    %793 = vmatmul.bf16.gmra.mxu0 %v704
    %v794 = vpop.f32.mrf.mxu0
    %v795 = vadd.f32 0.0, %v794
    %v796 = vpop.f32.mrf.mxu0
    %v797 = vadd.f32 0.0, %v796
    %798 = vmatmul.bf16.gmra.mxu0 %v705
    %v799 = vpop.f32.mrf.mxu0
    %v800 = vadd.f32 0.0, %v799
    %v801 = vpop.f32.mrf.mxu0
    %v802 = vadd.f32 0.0, %v801
    %803 = vmatmul.bf16.gmra.mxu0 %v706
    %v804 = vpop.f32.mrf.mxu0
    %v805 = vadd.f32 0.0, %v804
    %v806 = vpop.f32.mrf.mxu0
    %v807 = vadd.f32 0.0, %v806
    %808 = vmatmul.bf16.gmra.mxu0 %v707
    %v809 = vpop.f32.mrf.mxu0
    %v810 = vadd.f32 0.0, %v809
    %v811 = vpop.f32.mrf.mxu0
    %v812 = vadd.f32 0.0, %v811
    %813 = vmatmul.bf16.gmra.mxu0 %v708
    %v814 = vpop.f32.mrf.mxu0
    %v815 = vadd.f32 0.0, %v814
    %v816 = vpop.f32.mrf.mxu0
    %v817 = vadd.f32 0.0, %v816
    %818 = vmatmul.bf16.gmra.mxu0 %v709
    %v819 = vpop.f32.mrf.mxu0
    %v820 = vadd.f32 0.0, %v819
    %v821 = vpop.f32.mrf.mxu0
    %v822 = vadd.f32 0.0, %v821
    %823 = vdwg.mxu0
    %v824 = vadd.f32 %v527, %v785
    %v825 = vadd.f32 %v528, %v787
    %v826 = vadd.f32 %v529, %v790
    %v827 = vadd.f32 %v530, %v792
    %v828 = vadd.f32 %v531, %v795
    %v829 = vadd.f32 %v532, %v797
    %v830 = vadd.f32 %v533, %v800
    %v831 = vadd.f32 %v534, %v802
    %v832 = vadd.f32 %v535, %v805
    %v833 = vadd.f32 %v536, %v807
    %v834 = vadd.f32 %v537, %v810
    %v835 = vadd.f32 %v538, %v812
    %v836 = vadd.f32 %v539, %v815
    %v837 = vadd.f32 %v540, %v817
    %v838 = vadd.f32 %v541, %v820
    %v839 = vadd.f32 %v542, %v822
    %s840 = scalar_lea.vmem [#allocation8], 1
    %v841 = vld [vmem:[%s840] sm:$0x1]
    %v843 = vperm.slane %v841, 0
    %v845 = vadd.f32 %v824, %v843
    %v846 = vadd.f32 %v825, %v843
    %v847 = vadd.f32 %v826, %v843
    %v848 = vadd.f32 %v827, %v843
    %v849 = vadd.f32 %v828, %v843
    %v850 = vadd.f32 %v829, %v843
    %v851 = vadd.f32 %v830, %v843
    %v852 = vadd.f32 %v831, %v843
    %v853 = vadd.f32 %v832, %v843
    %v854 = vadd.f32 %v833, %v843
    %v855 = vadd.f32 %v834, %v843
    %v856 = vadd.f32 %v835, %v843
    %v857 = vadd.f32 %v836, %v843
    %v858 = vadd.f32 %v837, %v843
    %v859 = vadd.f32 %v838, %v843
    %v860 = vadd.f32 %v839, %v843
    %v861 = vmax.f32 %v845, 0.0
    %v862 = vmax.f32 %v846, 0.0
    %v863 = vmax.f32 %v847, 0.0
    %v864 = vmax.f32 %v848, 0.0
    %v865 = vmax.f32 %v849, 0.0
    %v866 = vmax.f32 %v850, 0.0
    %v867 = vmax.f32 %v851, 0.0
    %v868 = vmax.f32 %v852, 0.0
    %v869 = vmax.f32 %v853, 0.0
    %v870 = vmax.f32 %v854, 0.0
    %v871 = vmax.f32 %v855, 0.0
    %v872 = vmax.f32 %v856, 0.0
    %v873 = vmax.f32 %v857, 0.0
    %v874 = vmax.f32 %v858, 0.0
    %v875 = vmax.f32 %v859, 0.0
    %v876 = vmax.f32 %v860, 0.0
    %v877 = vpack.c.bf16 %v862, %v861
    %v878 = vpack.c.bf16 %v864, %v863
    %v879 = vpack.c.bf16 %v866, %v865
    %v880 = vpack.c.bf16 %v868, %v867
    %v881 = vpack.c.bf16 %v870, %v869
    %v882 = vpack.c.bf16 %v872, %v871
    %v883 = vpack.c.bf16 %v874, %v873
    %v884 = vpack.c.bf16 %v876, %v875
    %s885 = scalar_lea.vmem [#allocation5], 128
    %v886 = vld [vmem:[%s885] sm:$0xf]
    %v887 = vld [vmem:[%s885 + $0x4] sm:$0xf]
    %v888 = vld [vmem:[%s885 + $0x8] sm:$0xf]
    %v889 = vld [vmem:[%s885 + $0xc] sm:$0xf]
    %v890 = vld [vmem:[%s885 + $0x10] sm:$0xf]
    %v891 = vld [vmem:[%s885 + $0x14] sm:$0xf]
    %v892 = vld [vmem:[%s885 + $0x18] sm:$0xf]
    %v893 = vld [vmem:[%s885 + $0x1c] sm:$0xf]
    %v894 = vld [vmem:[%s885 + $0x20] sm:$0xf]
    %v895 = vld [vmem:[%s885 + $0x24] sm:$0xf]
    %v896 = vld [vmem:[%s885 + $0x28] sm:$0xf]
    %v897 = vld [vmem:[%s885 + $0x2c] sm:$0xf]
    %v898 = vld [vmem:[%s885 + $0x30] sm:$0xf]
    %v899 = vld [vmem:[%s885 + $0x34] sm:$0xf]
    %v900 = vld [vmem:[%s885 + $0x38] sm:$0xf]
    %v901 = vld [vmem:[%s885 + $0x3c] sm:$0xf]
    %s902 = scalar_lea.vmem %s4, 2
    %v903 = vld [vmem:[%s902] sm:$0x1]
    %v905 = vperm.slane %v903, 0
    %v923 = vunpack.c.l.b16 %v886
    %v924 = vunpack.c.l.b16 %v887
    %v925 = vunpack.c.l.b16 %v888
    %v926 = vunpack.c.l.b16 %v889
    %v927 = vunpack.c.l.b16 %v890
    %v928 = vunpack.c.l.b16 %v891
    %v929 = vunpack.c.l.b16 %v892
    %v930 = vunpack.c.l.b16 %v893
    %v931 = vunpack.c.l.b16 %v894
    %v932 = vunpack.c.l.b16 %v895
    %v933 = vunpack.c.l.b16 %v896
    %v934 = vunpack.c.l.b16 %v897
    %v935 = vunpack.c.l.b16 %v898
    %v936 = vunpack.c.l.b16 %v899
    %v937 = vunpack.c.l.b16 %v900
    %v938 = vunpack.c.l.b16 %v901
    %v939 = vpack.c.b16 %v924, %v923
    %v940 = vpack.c.b16 %v926, %v925
    %v941 = vpack.c.b16 %v928, %v927
    %v942 = vpack.c.b16 %v930, %v929
    %v943 = vpack.c.b16 %v932, %v931
    %v944 = vpack.c.b16 %v934, %v933
    %v945 = vpack.c.b16 %v936, %v935
    %v946 = vpack.c.b16 %v938, %v937
    %955 = vmatpush.bf16.msra.mxu0 %v946
    %956 = vmatpush.bf16.msra.mxu0 %v945
    %957 = vmatpush.bf16.msra.mxu0 %v944
    %958 = vmatpush.bf16.msra.mxu0 %v943
    %959 = vmatpush.bf16.msra.mxu0 %v942
    %960 = vmatpush.bf16.msra.mxu0 %v941
    %961 = vmatpush.bf16.msra.mxu0 %v940
    %962 = vmatpush.bf16.msra.mxu0 %v939
    %963 = vmatmul.bf16.gmra.mxu0 %v877
    %v964 = vpop.f32.mrf.mxu0
    %v965 = vadd.f32 %v905, %v964
    %v966 = vpop.f32.mrf.mxu0
    %v967 = vadd.f32 %v905, %v966
    %968 = vmatmul.bf16.gmra.mxu0 %v878
    %v969 = vpop.f32.mrf.mxu0
    %v970 = vadd.f32 %v905, %v969
    %v971 = vpop.f32.mrf.mxu0
    %v972 = vadd.f32 %v905, %v971
    %973 = vmatmul.bf16.gmra.mxu0 %v879
    %v974 = vpop.f32.mrf.mxu0
    %v975 = vadd.f32 %v905, %v974
    %v976 = vpop.f32.mrf.mxu0
    %v977 = vadd.f32 %v905, %v976
    %978 = vmatmul.bf16.gmra.mxu0 %v880
    %v979 = vpop.f32.mrf.mxu0
    %v980 = vadd.f32 %v905, %v979
    %v981 = vpop.f32.mrf.mxu0
    %v982 = vadd.f32 %v905, %v981
    %983 = vmatmul.bf16.gmra.mxu0 %v881
    %v984 = vpop.f32.mrf.mxu0
    %v985 = vadd.f32 %v905, %v984
    %v986 = vpop.f32.mrf.mxu0
    %v987 = vadd.f32 %v905, %v986
    %988 = vmatmul.bf16.gmra.mxu0 %v882
    %v989 = vpop.f32.mrf.mxu0
    %v990 = vadd.f32 %v905, %v989
    %v991 = vpop.f32.mrf.mxu0
    %v992 = vadd.f32 %v905, %v991
    %993 = vmatmul.bf16.gmra.mxu0 %v883
    %v994 = vpop.f32.mrf.mxu0
    %v995 = vadd.f32 %v905, %v994
    %v996 = vpop.f32.mrf.mxu0
    %v997 = vadd.f32 %v905, %v996
    %998 = vmatmul.bf16.gmra.mxu0 %v884
    %v999 = vpop.f32.mrf.mxu0
    %v1000 = vadd.f32 %v905, %v999
    %v1001 = vpop.f32.mrf.mxu0
    %v1002 = vadd.f32 %v905, %v1001
    %1003 = vdwg.mxu0
    %v1004 = vmax.f32 %v965, 0.0
    %v1005 = vmax.f32 %v967, 0.0
    %v1006 = vmax.f32 %v970, 0.0
    %v1007 = vmax.f32 %v972, 0.0
    %v1008 = vmax.f32 %v975, 0.0
    %v1009 = vmax.f32 %v977, 0.0
    %v1010 = vmax.f32 %v980, 0.0
    %v1011 = vmax.f32 %v982, 0.0
    %v1012 = vmax.f32 %v985, 0.0
    %v1013 = vmax.f32 %v987, 0.0
    %v1014 = vmax.f32 %v990, 0.0
    %v1015 = vmax.f32 %v992, 0.0
    %v1016 = vmax.f32 %v995, 0.0
    %v1017 = vmax.f32 %v997, 0.0
    %v1018 = vmax.f32 %v1000, 0.0
    %v1019 = vmax.f32 %v1002, 0.0
    %v1020 = vpack.c.bf16 %v1005, %v1004
    %v1021 = vpack.c.bf16 %v1007, %v1006
    %v1022 = vpack.c.bf16 %v1009, %v1008
    %v1023 = vpack.c.bf16 %v1011, %v1010
    %v1024 = vpack.c.bf16 %v1013, %v1012
    %v1025 = vpack.c.bf16 %v1015, %v1014
    %v1026 = vpack.c.bf16 %v1017, %v1016
    %v1027 = vpack.c.bf16 %v1019, %v1018
    %s1028 = scalar_lea.vmem [#allocation7], 128
    %v1029 = vld [vmem:[%s1028] sm:$0xf]
    %v1030 = vld [vmem:[%s1028 + $0x4] sm:$0xf]
    %v1031 = vld [vmem:[%s1028 + $0x8] sm:$0xf]
    %v1032 = vld [vmem:[%s1028 + $0xc] sm:$0xf]
    %v1033 = vld [vmem:[%s1028 + $0x10] sm:$0xf]
    %v1034 = vld [vmem:[%s1028 + $0x14] sm:$0xf]
    %v1035 = vld [vmem:[%s1028 + $0x18] sm:$0xf]
    %v1036 = vld [vmem:[%s1028 + $0x1c] sm:$0xf]
    %v1037 = vld [vmem:[%s1028 + $0x20] sm:$0xf]
    %v1038 = vld [vmem:[%s1028 + $0x24] sm:$0xf]
    %v1039 = vld [vmem:[%s1028 + $0x28] sm:$0xf]
    %v1040 = vld [vmem:[%s1028 + $0x2c] sm:$0xf]
    %v1041 = vld [vmem:[%s1028 + $0x30] sm:$0xf]
    %v1042 = vld [vmem:[%s1028 + $0x34] sm:$0xf]
    %v1043 = vld [vmem:[%s1028 + $0x38] sm:$0xf]
    %v1044 = vld [vmem:[%s1028 + $0x3c] sm:$0xf]
    %v1061 = vunpack.c.l.b16 %v1029
    %v1062 = vunpack.c.l.b16 %v1030
    %v1063 = vunpack.c.l.b16 %v1031
    %v1064 = vunpack.c.l.b16 %v1032
    %v1065 = vunpack.c.l.b16 %v1033
    %v1066 = vunpack.c.l.b16 %v1034
    %v1067 = vunpack.c.l.b16 %v1035
    %v1068 = vunpack.c.l.b16 %v1036
    %v1069 = vunpack.c.l.b16 %v1037
    %v1070 = vunpack.c.l.b16 %v1038
    %v1071 = vunpack.c.l.b16 %v1039
    %v1072 = vunpack.c.l.b16 %v1040
    %v1073 = vunpack.c.l.b16 %v1041
    %v1074 = vunpack.c.l.b16 %v1042
    %v1075 = vunpack.c.l.b16 %v1043
    %v1076 = vunpack.c.l.b16 %v1044
    %v1077 = vpack.c.b16 %v1062, %v1061
    %v1078 = vpack.c.b16 %v1064, %v1063
    %v1079 = vpack.c.b16 %v1066, %v1065
    %v1080 = vpack.c.b16 %v1068, %v1067
    %v1081 = vpack.c.b16 %v1070, %v1069
    %v1082 = vpack.c.b16 %v1072, %v1071
    %v1083 = vpack.c.b16 %v1074, %v1073
    %v1084 = vpack.c.b16 %v1076, %v1075
    %1093 = vmatpush.bf16.msra.mxu0 %v1084
    %1094 = vmatpush.bf16.msra.mxu0 %v1083
    %1095 = vmatpush.bf16.msra.mxu0 %v1082
    %1096 = vmatpush.bf16.msra.mxu0 %v1081
    %1097 = vmatpush.bf16.msra.mxu0 %v1080
    %1098 = vmatpush.bf16.msra.mxu0 %v1079
    %1099 = vmatpush.bf16.msra.mxu0 %v1078
    %1100 = vmatpush.bf16.msra.mxu0 %v1077
    %1101 = vmatmul.bf16.gmra.mxu0 %v1020
    %v1102 = vpop.f32.mrf.mxu0
    %v1103 = vadd.f32 0.0, %v1102
    %v1104 = vpop.f32.mrf.mxu0
    %v1105 = vadd.f32 0.0, %v1104
    %1106 = vmatmul.bf16.gmra.mxu0 %v1021
    %v1107 = vpop.f32.mrf.mxu0
    %v1108 = vadd.f32 0.0, %v1107
    %v1109 = vpop.f32.mrf.mxu0
    %v1110 = vadd.f32 0.0, %v1109
    %1111 = vmatmul.bf16.gmra.mxu0 %v1022
    %v1112 = vpop.f32.mrf.mxu0
    %v1113 = vadd.f32 0.0, %v1112
    %v1114 = vpop.f32.mrf.mxu0
    %v1115 = vadd.f32 0.0, %v1114
    %1116 = vmatmul.bf16.gmra.mxu0 %v1023
    %v1117 = vpop.f32.mrf.mxu0
    %v1118 = vadd.f32 0.0, %v1117
    %v1119 = vpop.f32.mrf.mxu0
    %v1120 = vadd.f32 0.0, %v1119
    %1121 = vmatmul.bf16.gmra.mxu0 %v1024
    %v1122 = vpop.f32.mrf.mxu0
    %v1123 = vadd.f32 0.0, %v1122
    %v1124 = vpop.f32.mrf.mxu0
    %v1125 = vadd.f32 0.0, %v1124
    %1126 = vmatmul.bf16.gmra.mxu0 %v1025
    %v1127 = vpop.f32.mrf.mxu0
    %v1128 = vadd.f32 0.0, %v1127
    %v1129 = vpop.f32.mrf.mxu0
    %v1130 = vadd.f32 0.0, %v1129
    %1131 = vmatmul.bf16.gmra.mxu0 %v1026
    %v1132 = vpop.f32.mrf.mxu0
    %v1133 = vadd.f32 0.0, %v1132
    %v1134 = vpop.f32.mrf.mxu0
    %v1135 = vadd.f32 0.0, %v1134
    %1136 = vmatmul.bf16.gmra.mxu0 %v1027
    %v1137 = vpop.f32.mrf.mxu0
    %v1138 = vadd.f32 0.0, %v1137
    %v1139 = vpop.f32.mrf.mxu0
    %v1140 = vadd.f32 0.0, %v1139
    %1141 = vdwg.mxu0
    %v1142 = vadd.f32 %v845, %v1103
    %v1143 = vadd.f32 %v846, %v1105
    %v1144 = vadd.f32 %v847, %v1108
    %v1145 = vadd.f32 %v848, %v1110
    %v1146 = vadd.f32 %v849, %v1113
    %v1147 = vadd.f32 %v850, %v1115
    %v1148 = vadd.f32 %v851, %v1118
    %v1149 = vadd.f32 %v852, %v1120
    %v1150 = vadd.f32 %v853, %v1123
    %v1151 = vadd.f32 %v854, %v1125
    %v1152 = vadd.f32 %v855, %v1128
    %v1153 = vadd.f32 %v856, %v1130
    %v1154 = vadd.f32 %v857, %v1133
    %v1155 = vadd.f32 %v858, %v1135
    %v1156 = vadd.f32 %v859, %v1138
    %v1157 = vadd.f32 %v860, %v1140
    %s1158 = scalar_lea.vmem [#allocation8], 2
    %v1159 = vld [vmem:[%s1158] sm:$0x1]
    %v1161 = vperm.slane %v1159, 0
    %v1163 = vadd.f32 %v1142, %v1161
    %v1164 = vadd.f32 %v1143, %v1161
    %v1165 = vadd.f32 %v1144, %v1161
    %v1166 = vadd.f32 %v1145, %v1161
    %v1167 = vadd.f32 %v1146, %v1161
    %v1168 = vadd.f32 %v1147, %v1161
    %v1169 = vadd.f32 %v1148, %v1161
    %v1170 = vadd.f32 %v1149, %v1161
    %v1171 = vadd.f32 %v1150, %v1161
    %v1172 = vadd.f32 %v1151, %v1161
    %v1173 = vadd.f32 %v1152, %v1161
    %v1174 = vadd.f32 %v1153, %v1161
    %v1175 = vadd.f32 %v1154, %v1161
    %v1176 = vadd.f32 %v1155, %v1161
    %v1177 = vadd.f32 %v1156, %v1161
    %v1178 = vadd.f32 %v1157, %v1161
    %v1179 = vmax.f32 %v1163, 0.0
    %v1180 = vmax.f32 %v1164, 0.0
    %v1181 = vmax.f32 %v1165, 0.0
    %v1182 = vmax.f32 %v1166, 0.0
    %v1183 = vmax.f32 %v1167, 0.0
    %v1184 = vmax.f32 %v1168, 0.0
    %v1185 = vmax.f32 %v1169, 0.0
    %v1186 = vmax.f32 %v1170, 0.0
    %v1187 = vmax.f32 %v1171, 0.0
    %v1188 = vmax.f32 %v1172, 0.0
    %v1189 = vmax.f32 %v1173, 0.0
    %v1190 = vmax.f32 %v1174, 0.0
    %v1191 = vmax.f32 %v1175, 0.0
    %v1192 = vmax.f32 %v1176, 0.0
    %v1193 = vmax.f32 %v1177, 0.0
    %v1194 = vmax.f32 %v1178, 0.0
    %v1195 = vpack.c.bf16 %v1180, %v1179
    %v1196 = vpack.c.bf16 %v1182, %v1181
    %v1197 = vpack.c.bf16 %v1184, %v1183
    %v1198 = vpack.c.bf16 %v1186, %v1185
    %v1199 = vpack.c.bf16 %v1188, %v1187
    %v1200 = vpack.c.bf16 %v1190, %v1189
    %v1201 = vpack.c.bf16 %v1192, %v1191
    %v1202 = vpack.c.bf16 %v1194, %v1193
    %s1203 = scalar_lea.vmem [#allocation5], 192
    %v1204 = vld [vmem:[%s1203] sm:$0xf]
    %v1205 = vld [vmem:[%s1203 + $0x4] sm:$0xf]
    %v1206 = vld [vmem:[%s1203 + $0x8] sm:$0xf]
    %v1207 = vld [vmem:[%s1203 + $0xc] sm:$0xf]
    %v1208 = vld [vmem:[%s1203 + $0x10] sm:$0xf]
    %v1209 = vld [vmem:[%s1203 + $0x14] sm:$0xf]
    %v1210 = vld [vmem:[%s1203 + $0x18] sm:$0xf]
    %v1211 = vld [vmem:[%s1203 + $0x1c] sm:$0xf]
    %v1212 = vld [vmem:[%s1203 + $0x20] sm:$0xf]
    %v1213 = vld [vmem:[%s1203 + $0x24] sm:$0xf]
    %v1214 = vld [vmem:[%s1203 + $0x28] sm:$0xf]
    %v1215 = vld [vmem:[%s1203 + $0x2c] sm:$0xf]
    %v1216 = vld [vmem:[%s1203 + $0x30] sm:$0xf]
    %v1217 = vld [vmem:[%s1203 + $0x34] sm:$0xf]
    %v1218 = vld [vmem:[%s1203 + $0x38] sm:$0xf]
    %v1219 = vld [vmem:[%s1203 + $0x3c] sm:$0xf]
    %s1220 = scalar_lea.vmem %s4, 3
    %v1221 = vld [vmem:[%s1220] sm:$0x1]
    %v1223 = vperm.slane %v1221, 0
    %v1241 = vunpack.c.l.b16 %v1204
    %v1242 = vunpack.c.l.b16 %v1205
    %v1243 = vunpack.c.l.b16 %v1206
    %v1244 = vunpack.c.l.b16 %v1207
    %v1245 = vunpack.c.l.b16 %v1208
    %v1246 = vunpack.c.l.b16 %v1209
    %v1247 = vunpack.c.l.b16 %v1210
    %v1248 = vunpack.c.l.b16 %v1211
    %v1249 = vunpack.c.l.b16 %v1212
    %v1250 = vunpack.c.l.b16 %v1213
    %v1251 = vunpack.c.l.b16 %v1214
    %v1252 = vunpack.c.l.b16 %v1215
    %v1253 = vunpack.c.l.b16 %v1216
    %v1254 = vunpack.c.l.b16 %v1217
    %v1255 = vunpack.c.l.b16 %v1218
    %v1256 = vunpack.c.l.b16 %v1219
    %v1257 = vpack.c.b16 %v1242, %v1241
    %v1258 = vpack.c.b16 %v1244, %v1243
    %v1259 = vpack.c.b16 %v1246, %v1245
    %v1260 = vpack.c.b16 %v1248, %v1247
    %v1261 = vpack.c.b16 %v1250, %v1249
    %v1262 = vpack.c.b16 %v1252, %v1251
    %v1263 = vpack.c.b16 %v1254, %v1253
    %v1264 = vpack.c.b16 %v1256, %v1255
    %1273 = vmatpush.bf16.msra.mxu0 %v1264
    %1274 = vmatpush.bf16.msra.mxu0 %v1263
    %1275 = vmatpush.bf16.msra.mxu0 %v1262
    %1276 = vmatpush.bf16.msra.mxu0 %v1261
    %1277 = vmatpush.bf16.msra.mxu0 %v1260
    %1278 = vmatpush.bf16.msra.mxu0 %v1259
    %1279 = vmatpush.bf16.msra.mxu0 %v1258
    %1280 = vmatpush.bf16.msra.mxu0 %v1257
    %1281 = vmatmul.bf16.gmra.mxu0 %v1195
    %v1282 = vpop.f32.mrf.mxu0
    %v1283 = vadd.f32 %v1223, %v1282
    %v1284 = vpop.f32.mrf.mxu0
    %v1285 = vadd.f32 %v1223, %v1284
    %1286 = vmatmul.bf16.gmra.mxu0 %v1196
    %v1287 = vpop.f32.mrf.mxu0
    %v1288 = vadd.f32 %v1223, %v1287
    %v1289 = vpop.f32.mrf.mxu0
    %v1290 = vadd.f32 %v1223, %v1289
    %1291 = vmatmul.bf16.gmra.mxu0 %v1197
    %v1292 = vpop.f32.mrf.mxu0
    %v1293 = vadd.f32 %v1223, %v1292
    %v1294 = vpop.f32.mrf.mxu0
    %v1295 = vadd.f32 %v1223, %v1294
    %1296 = vmatmul.bf16.gmra.mxu0 %v1198
    %v1297 = vpop.f32.mrf.mxu0
    %v1298 = vadd.f32 %v1223, %v1297
    %v1299 = vpop.f32.mrf.mxu0
    %v1300 = vadd.f32 %v1223, %v1299
    %1301 = vmatmul.bf16.gmra.mxu0 %v1199
    %v1302 = vpop.f32.mrf.mxu0
    %v1303 = vadd.f32 %v1223, %v1302
    %v1304 = vpop.f32.mrf.mxu0
    %v1305 = vadd.f32 %v1223, %v1304
    %1306 = vmatmul.bf16.gmra.mxu0 %v1200
    %v1307 = vpop.f32.mrf.mxu0
    %v1308 = vadd.f32 %v1223, %v1307
    %v1309 = vpop.f32.mrf.mxu0
    %v1310 = vadd.f32 %v1223, %v1309
    %1311 = vmatmul.bf16.gmra.mxu0 %v1201
    %v1312 = vpop.f32.mrf.mxu0
    %v1313 = vadd.f32 %v1223, %v1312
    %v1314 = vpop.f32.mrf.mxu0
    %v1315 = vadd.f32 %v1223, %v1314
    %1316 = vmatmul.bf16.gmra.mxu0 %v1202
    %v1317 = vpop.f32.mrf.mxu0
    %v1318 = vadd.f32 %v1223, %v1317
    %v1319 = vpop.f32.mrf.mxu0
    %v1320 = vadd.f32 %v1223, %v1319
    %1321 = vdwg.mxu0
    %v1322 = vmax.f32 %v1283, 0.0
    %v1323 = vmax.f32 %v1285, 0.0
    %v1324 = vmax.f32 %v1288, 0.0
    %v1325 = vmax.f32 %v1290, 0.0
    %v1326 = vmax.f32 %v1293, 0.0
    %v1327 = vmax.f32 %v1295, 0.0
    %v1328 = vmax.f32 %v1298, 0.0
    %v1329 = vmax.f32 %v1300, 0.0
    %v1330 = vmax.f32 %v1303, 0.0
    %v1331 = vmax.f32 %v1305, 0.0
    %v1332 = vmax.f32 %v1308, 0.0
    %v1333 = vmax.f32 %v1310, 0.0
    %v1334 = vmax.f32 %v1313, 0.0
    %v1335 = vmax.f32 %v1315, 0.0
    %v1336 = vmax.f32 %v1318, 0.0
    %v1337 = vmax.f32 %v1320, 0.0
    %v1338 = vpack.c.bf16 %v1323, %v1322
    %v1339 = vpack.c.bf16 %v1325, %v1324
    %v1340 = vpack.c.bf16 %v1327, %v1326
    %v1341 = vpack.c.bf16 %v1329, %v1328
    %v1342 = vpack.c.bf16 %v1331, %v1330
    %v1343 = vpack.c.bf16 %v1333, %v1332
    %v1344 = vpack.c.bf16 %v1335, %v1334
    %v1345 = vpack.c.bf16 %v1337, %v1336
    %s1346 = scalar_lea.vmem [#allocation7], 192
    %v1347 = vld [vmem:[%s1346] sm:$0xf]
    %v1348 = vld [vmem:[%s1346 + $0x4] sm:$0xf]
    %v1349 = vld [vmem:[%s1346 + $0x8] sm:$0xf]
    %v1350 = vld [vmem:[%s1346 + $0xc] sm:$0xf]
    %v1351 = vld [vmem:[%s1346 + $0x10] sm:$0xf]
    %v1352 = vld [vmem:[%s1346 + $0x14] sm:$0xf]
    %v1353 = vld [vmem:[%s1346 + $0x18] sm:$0xf]
    %v1354 = vld [vmem:[%s1346 + $0x1c] sm:$0xf]
    %v1355 = vld [vmem:[%s1346 + $0x20] sm:$0xf]
    %v1356 = vld [vmem:[%s1346 + $0x24] sm:$0xf]
    %v1357 = vld [vmem:[%s1346 + $0x28] sm:$0xf]
    %v1358 = vld [vmem:[%s1346 + $0x2c] sm:$0xf]
    %v1359 = vld [vmem:[%s1346 + $0x30] sm:$0xf]
    %v1360 = vld [vmem:[%s1346 + $0x34] sm:$0xf]
    %v1361 = vld [vmem:[%s1346 + $0x38] sm:$0xf]
    %v1362 = vld [vmem:[%s1346 + $0x3c] sm:$0xf]
    %v1379 = vunpack.c.l.b16 %v1347
    %v1380 = vunpack.c.l.b16 %v1348
    %v1381 = vunpack.c.l.b16 %v1349
    %v1382 = vunpack.c.l.b16 %v1350
    %v1383 = vunpack.c.l.b16 %v1351
    %v1384 = vunpack.c.l.b16 %v1352
    %v1385 = vunpack.c.l.b16 %v1353
    %v1386 = vunpack.c.l.b16 %v1354
    %v1387 = vunpack.c.l.b16 %v1355
    %v1388 = vunpack.c.l.b16 %v1356
    %v1389 = vunpack.c.l.b16 %v1357
    %v1390 = vunpack.c.l.b16 %v1358
    %v1391 = vunpack.c.l.b16 %v1359
    %v1392 = vunpack.c.l.b16 %v1360
    %v1393 = vunpack.c.l.b16 %v1361
    %v1394 = vunpack.c.l.b16 %v1362
    %v1395 = vpack.c.b16 %v1380, %v1379
    %v1396 = vpack.c.b16 %v1382, %v1381
    %v1397 = vpack.c.b16 %v1384, %v1383
    %v1398 = vpack.c.b16 %v1386, %v1385
    %v1399 = vpack.c.b16 %v1388, %v1387
    %v1400 = vpack.c.b16 %v1390, %v1389
    %v1401 = vpack.c.b16 %v1392, %v1391
    %v1402 = vpack.c.b16 %v1394, %v1393
    %1411 = vmatpush.bf16.msra.mxu0 %v1402
    %1412 = vmatpush.bf16.msra.mxu0 %v1401
    %1413 = vmatpush.bf16.msra.mxu0 %v1400
    %1414 = vmatpush.bf16.msra.mxu0 %v1399
    %1415 = vmatpush.bf16.msra.mxu0 %v1398
    %1416 = vmatpush.bf16.msra.mxu0 %v1397
    %1417 = vmatpush.bf16.msra.mxu0 %v1396
    %1418 = vmatpush.bf16.msra.mxu0 %v1395
    %1419 = vmatmul.bf16.gmra.mxu0 %v1338
    %v1420 = vpop.f32.mrf.mxu0
    %v1421 = vadd.f32 0.0, %v1420
    %v1422 = vpop.f32.mrf.mxu0
    %v1423 = vadd.f32 0.0, %v1422
    %1424 = vmatmul.bf16.gmra.mxu0 %v1339
    %v1425 = vpop.f32.mrf.mxu0
    %v1426 = vadd.f32 0.0, %v1425
    %v1427 = vpop.f32.mrf.mxu0
    %v1428 = vadd.f32 0.0, %v1427
    %1429 = vmatmul.bf16.gmra.mxu0 %v1340
    %v1430 = vpop.f32.mrf.mxu0
    %v1431 = vadd.f32 0.0, %v1430
    %v1432 = vpop.f32.mrf.mxu0
    %v1433 = vadd.f32 0.0, %v1432
    %1434 = vmatmul.bf16.gmra.mxu0 %v1341
    %v1435 = vpop.f32.mrf.mxu0
    %v1436 = vadd.f32 0.0, %v1435
    %v1437 = vpop.f32.mrf.mxu0
    %v1438 = vadd.f32 0.0, %v1437
    %1439 = vmatmul.bf16.gmra.mxu0 %v1342
    %v1440 = vpop.f32.mrf.mxu0
    %v1441 = vadd.f32 0.0, %v1440
    %v1442 = vpop.f32.mrf.mxu0
    %v1443 = vadd.f32 0.0, %v1442
    %1444 = vmatmul.bf16.gmra.mxu0 %v1343
    %v1445 = vpop.f32.mrf.mxu0
    %v1446 = vadd.f32 0.0, %v1445
    %v1447 = vpop.f32.mrf.mxu0
    %v1448 = vadd.f32 0.0, %v1447
    %1449 = vmatmul.bf16.gmra.mxu0 %v1344
    %v1450 = vpop.f32.mrf.mxu0
    %v1451 = vadd.f32 0.0, %v1450
    %v1452 = vpop.f32.mrf.mxu0
    %v1453 = vadd.f32 0.0, %v1452
    %1454 = vmatmul.bf16.gmra.mxu0 %v1345
    %v1455 = vpop.f32.mrf.mxu0
    %v1456 = vadd.f32 0.0, %v1455
    %v1457 = vpop.f32.mrf.mxu0
    %v1458 = vadd.f32 0.0, %v1457
    %1459 = vdwg.mxu0
    %v1460 = vadd.f32 %v1163, %v1421
    %v1461 = vadd.f32 %v1164, %v1423
    %v1462 = vadd.f32 %v1165, %v1426
    %v1463 = vadd.f32 %v1166, %v1428
    %v1464 = vadd.f32 %v1167, %v1431
    %v1465 = vadd.f32 %v1168, %v1433
    %v1466 = vadd.f32 %v1169, %v1436
    %v1467 = vadd.f32 %v1170, %v1438
    %v1468 = vadd.f32 %v1171, %v1441
    %v1469 = vadd.f32 %v1172, %v1443
    %v1470 = vadd.f32 %v1173, %v1446
    %v1471 = vadd.f32 %v1174, %v1448
    %v1472 = vadd.f32 %v1175, %v1451
    %v1473 = vadd.f32 %v1176, %v1453
    %v1474 = vadd.f32 %v1177, %v1456
    %v1475 = vadd.f32 %v1178, %v1458
    %s1476 = scalar_lea.vmem [#allocation8], 3
    %v1477 = vld [vmem:[%s1476] sm:$0x1]
    %v1479 = vperm.slane %v1477, 0
    %v1481 = vadd.f32 %v1460, %v1479
    %v1482 = vadd.f32 %v1461, %v1479
    %v1483 = vadd.f32 %v1462, %v1479
    %v1484 = vadd.f32 %v1463, %v1479
    %v1485 = vadd.f32 %v1464, %v1479
    %v1486 = vadd.f32 %v1465, %v1479
    %v1487 = vadd.f32 %v1466, %v1479
    %v1488 = vadd.f32 %v1467, %v1479
    %v1489 = vadd.f32 %v1468, %v1479
    %v1490 = vadd.f32 %v1469, %v1479
    %v1491 = vadd.f32 %v1470, %v1479
    %v1492 = vadd.f32 %v1471, %v1479
    %v1493 = vadd.f32 %v1472, %v1479
    %v1494 = vadd.f32 %v1473, %v1479
    %v1495 = vadd.f32 %v1474, %v1479
    %v1496 = vadd.f32 %v1475, %v1479
    %v1497 = vmax.f32 %v1481, 0.0
    %v1498 = vmax.f32 %v1482, 0.0
    %v1499 = vmax.f32 %v1483, 0.0
    %v1500 = vmax.f32 %v1484, 0.0
    %v1501 = vmax.f32 %v1485, 0.0
    %v1502 = vmax.f32 %v1486, 0.0
    %v1503 = vmax.f32 %v1487, 0.0
    %v1504 = vmax.f32 %v1488, 0.0
    %v1505 = vmax.f32 %v1489, 0.0
    %v1506 = vmax.f32 %v1490, 0.0
    %v1507 = vmax.f32 %v1491, 0.0
    %v1508 = vmax.f32 %v1492, 0.0
    %v1509 = vmax.f32 %v1493, 0.0
    %v1510 = vmax.f32 %v1494, 0.0
    %v1511 = vmax.f32 %v1495, 0.0
    %v1512 = vmax.f32 %v1496, 0.0
    %v1513 = vpack.c.bf16 %v1498, %v1497
    %v1514 = vpack.c.bf16 %v1500, %v1499
    %v1515 = vpack.c.bf16 %v1502, %v1501
    %v1516 = vpack.c.bf16 %v1504, %v1503
    %v1517 = vpack.c.bf16 %v1506, %v1505
    %v1518 = vpack.c.bf16 %v1508, %v1507
    %v1519 = vpack.c.bf16 %v1510, %v1509
    %v1520 = vpack.c.bf16 %v1512, %v1511
    %s1521 = scalar_lea.vmem [#allocation5], 256
    %v1522 = vld [vmem:[%s1521] sm:$0xf]
    %v1523 = vld [vmem:[%s1521 + $0x4] sm:$0xf]
    %v1524 = vld [vmem:[%s1521 + $0x8] sm:$0xf]
    %v1525 = vld [vmem:[%s1521 + $0xc] sm:$0xf]
    %v1526 = vld [vmem:[%s1521 + $0x10] sm:$0xf]
    %v1527 = vld [vmem:[%s1521 + $0x14] sm:$0xf]
    %v1528 = vld [vmem:[%s1521 + $0x18] sm:$0xf]
    %v1529 = vld [vmem:[%s1521 + $0x1c] sm:$0xf]
    %v1530 = vld [vmem:[%s1521 + $0x20] sm:$0xf]
    %v1531 = vld [vmem:[%s1521 + $0x24] sm:$0xf]
    %v1532 = vld [vmem:[%s1521 + $0x28] sm:$0xf]
    %v1533 = vld [vmem:[%s1521 + $0x2c] sm:$0xf]
    %v1534 = vld [vmem:[%s1521 + $0x30] sm:$0xf]
    %v1535 = vld [vmem:[%s1521 + $0x34] sm:$0xf]
    %v1536 = vld [vmem:[%s1521 + $0x38] sm:$0xf]
    %v1537 = vld [vmem:[%s1521 + $0x3c] sm:$0xf]
    %s1538 = scalar_lea.vmem %s4, 4
    %v1539 = vld [vmem:[%s1538] sm:$0x1]
    %v1541 = vperm.slane %v1539, 0
    %v1559 = vunpack.c.l.b16 %v1522
    %v1560 = vunpack.c.l.b16 %v1523
    %v1561 = vunpack.c.l.b16 %v1524
    %v1562 = vunpack.c.l.b16 %v1525
    %v1563 = vunpack.c.l.b16 %v1526
    %v1564 = vunpack.c.l.b16 %v1527
    %v1565 = vunpack.c.l.b16 %v1528
    %v1566 = vunpack.c.l.b16 %v1529
    %v1567 = vunpack.c.l.b16 %v1530
    %v1568 = vunpack.c.l.b16 %v1531
    %v1569 = vunpack.c.l.b16 %v1532
    %v1570 = vunpack.c.l.b16 %v1533
    %v1571 = vunpack.c.l.b16 %v1534
    %v1572 = vunpack.c.l.b16 %v1535
    %v1573 = vunpack.c.l.b16 %v1536
    %v1574 = vunpack.c.l.b16 %v1537
    %v1575 = vpack.c.b16 %v1560, %v1559
    %v1576 = vpack.c.b16 %v1562, %v1561
    %v1577 = vpack.c.b16 %v1564, %v1563
    %v1578 = vpack.c.b16 %v1566, %v1565
    %v1579 = vpack.c.b16 %v1568, %v1567
    %v1580 = vpack.c.b16 %v1570, %v1569
    %v1581 = vpack.c.b16 %v1572, %v1571
    %v1582 = vpack.c.b16 %v1574, %v1573
    %1591 = vmatpush.bf16.msra.mxu0 %v1582
    %1592 = vmatpush.bf16.msra.mxu0 %v1581
    %1593 = vmatpush.bf16.msra.mxu0 %v1580
    %1594 = vmatpush.bf16.msra.mxu0 %v1579
    %1595 = vmatpush.bf16.msra.mxu0 %v1578
    %1596 = vmatpush.bf16.msra.mxu0 %v1577
    %1597 = vmatpush.bf16.msra.mxu0 %v1576
    %1598 = vmatpush.bf16.msra.mxu0 %v1575
    %1599 = vmatmul.bf16.gmra.mxu0 %v1513
    %v1600 = vpop.f32.mrf.mxu0
    %v1601 = vadd.f32 %v1541, %v1600
    %v1602 = vpop.f32.mrf.mxu0
    %v1603 = vadd.f32 %v1541, %v1602
    %1604 = vmatmul.bf16.gmra.mxu0 %v1514
    %v1605 = vpop.f32.mrf.mxu0
    %v1606 = vadd.f32 %v1541, %v1605
    %v1607 = vpop.f32.mrf.mxu0
    %v1608 = vadd.f32 %v1541, %v1607
    %1609 = vmatmul.bf16.gmra.mxu0 %v1515
    %v1610 = vpop.f32.mrf.mxu0
    %v1611 = vadd.f32 %v1541, %v1610
    %v1612 = vpop.f32.mrf.mxu0
    %v1613 = vadd.f32 %v1541, %v1612
    %1614 = vmatmul.bf16.gmra.mxu0 %v1516
    %v1615 = vpop.f32.mrf.mxu0
    %v1616 = vadd.f32 %v1541, %v1615
    %v1617 = vpop.f32.mrf.mxu0
    %v1618 = vadd.f32 %v1541, %v1617
    %1619 = vmatmul.bf16.gmra.mxu0 %v1517
    %v1620 = vpop.f32.mrf.mxu0
    %v1621 = vadd.f32 %v1541, %v1620
    %v1622 = vpop.f32.mrf.mxu0
    %v1623 = vadd.f32 %v1541, %v1622
    %1624 = vmatmul.bf16.gmra.mxu0 %v1518
    %v1625 = vpop.f32.mrf.mxu0
    %v1626 = vadd.f32 %v1541, %v1625
    %v1627 = vpop.f32.mrf.mxu0
    %v1628 = vadd.f32 %v1541, %v1627
    %1629 = vmatmul.bf16.gmra.mxu0 %v1519
    %v1630 = vpop.f32.mrf.mxu0
    %v1631 = vadd.f32 %v1541, %v1630
    %v1632 = vpop.f32.mrf.mxu0
    %v1633 = vadd.f32 %v1541, %v1632
    %1634 = vmatmul.bf16.gmra.mxu0 %v1520
    %v1635 = vpop.f32.mrf.mxu0
    %v1636 = vadd.f32 %v1541, %v1635
    %v1637 = vpop.f32.mrf.mxu0
    %v1638 = vadd.f32 %v1541, %v1637
    %1639 = vdwg.mxu0
    %v1640 = vmax.f32 %v1601, 0.0
    %v1641 = vmax.f32 %v1603, 0.0
    %v1642 = vmax.f32 %v1606, 0.0
    %v1643 = vmax.f32 %v1608, 0.0
    %v1644 = vmax.f32 %v1611, 0.0
    %v1645 = vmax.f32 %v1613, 0.0
    %v1646 = vmax.f32 %v1616, 0.0
    %v1647 = vmax.f32 %v1618, 0.0
    %v1648 = vmax.f32 %v1621, 0.0
    %v1649 = vmax.f32 %v1623, 0.0
    %v1650 = vmax.f32 %v1626, 0.0
    %v1651 = vmax.f32 %v1628, 0.0
    %v1652 = vmax.f32 %v1631, 0.0
    %v1653 = vmax.f32 %v1633, 0.0
    %v1654 = vmax.f32 %v1636, 0.0
    %v1655 = vmax.f32 %v1638, 0.0
    %v1656 = vpack.c.bf16 %v1641, %v1640
    %v1657 = vpack.c.bf16 %v1643, %v1642
    %v1658 = vpack.c.bf16 %v1645, %v1644
    %v1659 = vpack.c.bf16 %v1647, %v1646
    %v1660 = vpack.c.bf16 %v1649, %v1648
    %v1661 = vpack.c.bf16 %v1651, %v1650
    %v1662 = vpack.c.bf16 %v1653, %v1652
    %v1663 = vpack.c.bf16 %v1655, %v1654
    %s1664 = scalar_lea.vmem [#allocation7], 256
    %v1665 = vld [vmem:[%s1664] sm:$0xf]
    %v1666 = vld [vmem:[%s1664 + $0x4] sm:$0xf]
    %v1667 = vld [vmem:[%s1664 + $0x8] sm:$0xf]
    %v1668 = vld [vmem:[%s1664 + $0xc] sm:$0xf]
    %v1669 = vld [vmem:[%s1664 + $0x10] sm:$0xf]
    %v1670 = vld [vmem:[%s1664 + $0x14] sm:$0xf]
    %v1671 = vld [vmem:[%s1664 + $0x18] sm:$0xf]
    %v1672 = vld [vmem:[%s1664 + $0x1c] sm:$0xf]
    %v1673 = vld [vmem:[%s1664 + $0x20] sm:$0xf]
    %v1674 = vld [vmem:[%s1664 + $0x24] sm:$0xf]
    %v1675 = vld [vmem:[%s1664 + $0x28] sm:$0xf]
    %v1676 = vld [vmem:[%s1664 + $0x2c] sm:$0xf]
    %v1677 = vld [vmem:[%s1664 + $0x30] sm:$0xf]
    %v1678 = vld [vmem:[%s1664 + $0x34] sm:$0xf]
    %v1679 = vld [vmem:[%s1664 + $0x38] sm:$0xf]
    %v1680 = vld [vmem:[%s1664 + $0x3c] sm:$0xf]
    %v1697 = vunpack.c.l.b16 %v1665
    %v1698 = vunpack.c.l.b16 %v1666
    %v1699 = vunpack.c.l.b16 %v1667
    %v1700 = vunpack.c.l.b16 %v1668
    %v1701 = vunpack.c.l.b16 %v1669
    %v1702 = vunpack.c.l.b16 %v1670
    %v1703 = vunpack.c.l.b16 %v1671
    %v1704 = vunpack.c.l.b16 %v1672
    %v1705 = vunpack.c.l.b16 %v1673
    %v1706 = vunpack.c.l.b16 %v1674
    %v1707 = vunpack.c.l.b16 %v1675
    %v1708 = vunpack.c.l.b16 %v1676
    %v1709 = vunpack.c.l.b16 %v1677
    %v1710 = vunpack.c.l.b16 %v1678
    %v1711 = vunpack.c.l.b16 %v1679
    %v1712 = vunpack.c.l.b16 %v1680
    %v1713 = vpack.c.b16 %v1698, %v1697
    %v1714 = vpack.c.b16 %v1700, %v1699
    %v1715 = vpack.c.b16 %v1702, %v1701
    %v1716 = vpack.c.b16 %v1704, %v1703
    %v1717 = vpack.c.b16 %v1706, %v1705
    %v1718 = vpack.c.b16 %v1708, %v1707
    %v1719 = vpack.c.b16 %v1710, %v1709
    %v1720 = vpack.c.b16 %v1712, %v1711
    %1729 = vmatpush.bf16.msra.mxu0 %v1720
    %1730 = vmatpush.bf16.msra.mxu0 %v1719
    %1731 = vmatpush.bf16.msra.mxu0 %v1718
    %1732 = vmatpush.bf16.msra.mxu0 %v1717
    %1733 = vmatpush.bf16.msra.mxu0 %v1716
    %1734 = vmatpush.bf16.msra.mxu0 %v1715
    %1735 = vmatpush.bf16.msra.mxu0 %v1714
    %1736 = vmatpush.bf16.msra.mxu0 %v1713
    %1737 = vmatmul.bf16.gmra.mxu0 %v1656
    %v1738 = vpop.f32.mrf.mxu0
    %v1739 = vadd.f32 0.0, %v1738
    %v1740 = vpop.f32.mrf.mxu0
    %v1741 = vadd.f32 0.0, %v1740
    %1742 = vmatmul.bf16.gmra.mxu0 %v1657
    %v1743 = vpop.f32.mrf.mxu0
    %v1744 = vadd.f32 0.0, %v1743
    %v1745 = vpop.f32.mrf.mxu0
    %v1746 = vadd.f32 0.0, %v1745
    %1747 = vmatmul.bf16.gmra.mxu0 %v1658
    %v1748 = vpop.f32.mrf.mxu0
    %v1749 = vadd.f32 0.0, %v1748
    %v1750 = vpop.f32.mrf.mxu0
    %v1751 = vadd.f32 0.0, %v1750
    %1752 = vmatmul.bf16.gmra.mxu0 %v1659
    %v1753 = vpop.f32.mrf.mxu0
    %v1754 = vadd.f32 0.0, %v1753
    %v1755 = vpop.f32.mrf.mxu0
    %v1756 = vadd.f32 0.0, %v1755
    %1757 = vmatmul.bf16.gmra.mxu0 %v1660
    %v1758 = vpop.f32.mrf.mxu0
    %v1759 = vadd.f32 0.0, %v1758
    %v1760 = vpop.f32.mrf.mxu0
    %v1761 = vadd.f32 0.0, %v1760
    %1762 = vmatmul.bf16.gmra.mxu0 %v1661
    %v1763 = vpop.f32.mrf.mxu0
    %v1764 = vadd.f32 0.0, %v1763
    %v1765 = vpop.f32.mrf.mxu0
    %v1766 = vadd.f32 0.0, %v1765
    %1767 = vmatmul.bf16.gmra.mxu0 %v1662
    %v1768 = vpop.f32.mrf.mxu0
    %v1769 = vadd.f32 0.0, %v1768
    %v1770 = vpop.f32.mrf.mxu0
    %v1771 = vadd.f32 0.0, %v1770
    %1772 = vmatmul.bf16.gmra.mxu0 %v1663
    %v1773 = vpop.f32.mrf.mxu0
    %v1774 = vadd.f32 0.0, %v1773
    %v1775 = vpop.f32.mrf.mxu0
    %v1776 = vadd.f32 0.0, %v1775
    %1777 = vdwg.mxu0
    %v1778 = vadd.f32 %v1481, %v1739
    %v1779 = vadd.f32 %v1482, %v1741
    %v1780 = vadd.f32 %v1483, %v1744
    %v1781 = vadd.f32 %v1484, %v1746
    %v1782 = vadd.f32 %v1485, %v1749
    %v1783 = vadd.f32 %v1486, %v1751
    %v1784 = vadd.f32 %v1487, %v1754
    %v1785 = vadd.f32 %v1488, %v1756
    %v1786 = vadd.f32 %v1489, %v1759
    %v1787 = vadd.f32 %v1490, %v1761
    %v1788 = vadd.f32 %v1491, %v1764
    %v1789 = vadd.f32 %v1492, %v1766
    %v1790 = vadd.f32 %v1493, %v1769
    %v1791 = vadd.f32 %v1494, %v1771
    %v1792 = vadd.f32 %v1495, %v1774
    %v1793 = vadd.f32 %v1496, %v1776
    %s1794 = scalar_lea.vmem [#allocation8], 4
    %v1795 = vld [vmem:[%s1794] sm:$0x1]
    %v1797 = vperm.slane %v1795, 0
    %v1799 = vadd.f32 %v1778, %v1797
    %v1800 = vadd.f32 %v1779, %v1797
    %v1801 = vadd.f32 %v1780, %v1797
    %v1802 = vadd.f32 %v1781, %v1797
    %v1803 = vadd.f32 %v1782, %v1797
    %v1804 = vadd.f32 %v1783, %v1797
    %v1805 = vadd.f32 %v1784, %v1797
    %v1806 = vadd.f32 %v1785, %v1797
    %v1807 = vadd.f32 %v1786, %v1797
    %v1808 = vadd.f32 %v1787, %v1797
    %v1809 = vadd.f32 %v1788, %v1797
    %v1810 = vadd.f32 %v1789, %v1797
    %v1811 = vadd.f32 %v1790, %v1797
    %v1812 = vadd.f32 %v1791, %v1797
    %v1813 = vadd.f32 %v1792, %v1797
    %v1814 = vadd.f32 %v1793, %v1797
    %v1815 = vmax.f32 %v1799, 0.0
    %v1816 = vmax.f32 %v1800, 0.0
    %v1817 = vmax.f32 %v1801, 0.0
    %v1818 = vmax.f32 %v1802, 0.0
    %v1819 = vmax.f32 %v1803, 0.0
    %v1820 = vmax.f32 %v1804, 0.0
    %v1821 = vmax.f32 %v1805, 0.0
    %v1822 = vmax.f32 %v1806, 0.0
    %v1823 = vmax.f32 %v1807, 0.0
    %v1824 = vmax.f32 %v1808, 0.0
    %v1825 = vmax.f32 %v1809, 0.0
    %v1826 = vmax.f32 %v1810, 0.0
    %v1827 = vmax.f32 %v1811, 0.0
    %v1828 = vmax.f32 %v1812, 0.0
    %v1829 = vmax.f32 %v1813, 0.0
    %v1830 = vmax.f32 %v1814, 0.0
    %v1831 = vpack.c.bf16 %v1816, %v1815
    %v1832 = vpack.c.bf16 %v1818, %v1817
    %v1833 = vpack.c.bf16 %v1820, %v1819
    %v1834 = vpack.c.bf16 %v1822, %v1821
    %v1835 = vpack.c.bf16 %v1824, %v1823
    %v1836 = vpack.c.bf16 %v1826, %v1825
    %v1837 = vpack.c.bf16 %v1828, %v1827
    %v1838 = vpack.c.bf16 %v1830, %v1829
    %v1839 = vld [vmem:[#allocation10] sm:$0xf]
    %v1840 = vld [vmem:[#allocation10 + $0x4] sm:$0xf]
    %v1841 = vld [vmem:[#allocation10 + $0x8] sm:$0xf]
    %v1842 = vld [vmem:[#allocation10 + $0xc] sm:$0xf]
    %v1843 = vld [vmem:[#allocation10 + $0x10] sm:$0xf]
    %v1844 = vld [vmem:[#allocation10 + $0x14] sm:$0xf]
    %v1845 = vld [vmem:[#allocation10 + $0x18] sm:$0xf]
    %v1846 = vld [vmem:[#allocation10 + $0x1c] sm:$0xf]
    %v1847 = vld [vmem:[#allocation10 + $0x20] sm:$0xf]
    %v1848 = vld [vmem:[#allocation10 + $0x24] sm:$0xf]
    %v1849 = vld [vmem:[#allocation10 + $0x28] sm:$0xf]
    %v1850 = vld [vmem:[#allocation10 + $0x2c] sm:$0xf]
    %v1851 = vld [vmem:[#allocation10 + $0x30] sm:$0xf]
    %v1852 = vld [vmem:[#allocation10 + $0x34] sm:$0xf]
    %v1853 = vld [vmem:[#allocation10 + $0x38] sm:$0xf]
    %v1854 = vld [vmem:[#allocation10 + $0x3c] sm:$0xf]
    %v1855 = vld [vmem:[%s8] sm:$0x1]
    %v1857 = vperm.slane %v1855, 0
    %v1875 = vunpack.c.l.b16 %v1839
    %v1876 = vunpack.c.l.b16 %v1840
    %v1877 = vunpack.c.l.b16 %v1841
    %v1878 = vunpack.c.l.b16 %v1842
    %v1879 = vunpack.c.l.b16 %v1843
    %v1880 = vunpack.c.l.b16 %v1844
    %v1881 = vunpack.c.l.b16 %v1845
    %v1882 = vunpack.c.l.b16 %v1846
    %v1883 = vunpack.c.l.b16 %v1847
    %v1884 = vunpack.c.l.b16 %v1848
    %v1885 = vunpack.c.l.b16 %v1849
    %v1886 = vunpack.c.l.b16 %v1850
    %v1887 = vunpack.c.l.b16 %v1851
    %v1888 = vunpack.c.l.b16 %v1852
    %v1889 = vunpack.c.l.b16 %v1853
    %v1890 = vunpack.c.l.b16 %v1854
    %v1891 = vpack.c.b16 %v1876, %v1875
    %v1892 = vpack.c.b16 %v1878, %v1877
    %v1893 = vpack.c.b16 %v1880, %v1879
    %v1894 = vpack.c.b16 %v1882, %v1881
    %v1895 = vpack.c.b16 %v1884, %v1883
    %v1896 = vpack.c.b16 %v1886, %v1885
    %v1897 = vpack.c.b16 %v1888, %v1887
    %v1898 = vpack.c.b16 %v1890, %v1889
    %1907 = vmatpush.bf16.msra.mxu0 %v1898
    %1908 = vmatpush.bf16.msra.mxu0 %v1897
    %1909 = vmatpush.bf16.msra.mxu0 %v1896
    %1910 = vmatpush.bf16.msra.mxu0 %v1895
    %1911 = vmatpush.bf16.msra.mxu0 %v1894
    %1912 = vmatpush.bf16.msra.mxu0 %v1893
    %1913 = vmatpush.bf16.msra.mxu0 %v1892
    %1914 = vmatpush.bf16.msra.mxu0 %v1891
    %1915 = vmatmul.bf16.gmra.mxu0 %v1831
    %v1916 = vpop.f32.mrf.mxu0
    %v1917 = vadd.f32 %v1857, %v1916
    %v1918 = vpop.f32.mrf.mxu0
    %v1919 = vadd.f32 %v1857, %v1918
    %1920 = vmatmul.bf16.gmra.mxu0 %v1832
    %v1921 = vpop.f32.mrf.mxu0
    %v1922 = vadd.f32 %v1857, %v1921
    %v1923 = vpop.f32.mrf.mxu0
    %v1924 = vadd.f32 %v1857, %v1923
    %1925 = vmatmul.bf16.gmra.mxu0 %v1833
    %v1926 = vpop.f32.mrf.mxu0
    %v1927 = vadd.f32 %v1857, %v1926
    %v1928 = vpop.f32.mrf.mxu0
    %v1929 = vadd.f32 %v1857, %v1928
    %1930 = vmatmul.bf16.gmra.mxu0 %v1834
    %v1931 = vpop.f32.mrf.mxu0
    %v1932 = vadd.f32 %v1857, %v1931
    %v1933 = vpop.f32.mrf.mxu0
    %v1934 = vadd.f32 %v1857, %v1933
    %1935 = vmatmul.bf16.gmra.mxu0 %v1835
    %v1936 = vpop.f32.mrf.mxu0
    %v1937 = vadd.f32 %v1857, %v1936
    %v1938 = vpop.f32.mrf.mxu0
    %v1939 = vadd.f32 %v1857, %v1938
    %1940 = vmatmul.bf16.gmra.mxu0 %v1836
    %v1941 = vpop.f32.mrf.mxu0
    %v1942 = vadd.f32 %v1857, %v1941
    %v1943 = vpop.f32.mrf.mxu0
    %v1944 = vadd.f32 %v1857, %v1943
    %1945 = vmatmul.bf16.gmra.mxu0 %v1837
    %v1946 = vpop.f32.mrf.mxu0
    %v1947 = vadd.f32 %v1857, %v1946
    %v1948 = vpop.f32.mrf.mxu0
    %v1949 = vadd.f32 %v1857, %v1948
    %1950 = vmatmul.bf16.gmra.mxu0 %v1838
    %v1951 = vpop.f32.mrf.mxu0
    %v1952 = vadd.f32 %v1857, %v1951
    %v1953 = vpop.f32.mrf.mxu0
    %v1954 = vadd.f32 %v1857, %v1953
    %1955 = vdwg.mxu0
    %1956 = vst [vmem:[#allocation11] sm:$0xff] %v1917
    %1957 = vst [vmem:[#allocation11 + $0x8] sm:$0xff] %v1919
    %1958 = vst [vmem:[#allocation11 + $0x10] sm:$0xff] %v1922
    %1959 = vst [vmem:[#allocation11 + $0x18] sm:$0xff] %v1924
    %1960 = vst [vmem:[#allocation11 + $0x20] sm:$0xff] %v1927
    %1961 = vst [vmem:[#allocation11 + $0x28] sm:$0xff] %v1929
    %1962 = vst [vmem:[#allocation11 + $0x30] sm:$0xff] %v1932
    %1963 = vst [vmem:[#allocation11 + $0x38] sm:$0xff] %v1934
    %1964 = vst [vmem:[#allocation11 + $0x40] sm:$0xff] %v1937
    %1965 = vst [vmem:[#allocation11 + $0x48] sm:$0xff] %v1939
    %1966 = vst [vmem:[#allocation11 + $0x50] sm:$0xff] %v1942
    %1967 = vst [vmem:[#allocation11 + $0x58] sm:$0xff] %v1944
    %1968 = vst [vmem:[#allocation11 + $0x60] sm:$0xff] %v1947
    %1969 = vst [vmem:[#allocation11 + $0x68] sm:$0xff] %v1949
    %1970 = vst [vmem:[#allocation11 + $0x70] sm:$0xff] %v1952
    %1971 = vst [vmem:[#allocation11 + $0x78] sm:$0xff] %v1954
    // Predicated region
    $region58: #{tpu_custom_call.1} parent=1 // pred_check
      _
    $region59: #{tpu_custom_call.1} parent=1 // pred_check_branch
      %1973 = sbr.rel (0) target = $region61
    $region60: #{tpu_custom_call.1} parent=1 // pred_region
      %1975 = vsyncadd [#allocation4], 0
      %s1976 = sshll.u32 [#allocation11], 4
      %s1977 = int_to_ptr.vmem [resolvable:$true] %s1976
      %s1978 = sshll.u32 %s9, 4
      %s1979 = int_to_ptr.hbm [resolvable:$true] %s1978
      %1984 = dma.vmem_to_hbm [thread:$0]  %s1977, 2048, %s1979, [#allocation4], 128, 128, 8
    $region61: #{tpu_custom_call.1} parent=1 // pred_fallthru
      _
    // Predicated region
    $region62: #{tpu_custom_call.1} parent=1 // pred_check
      _
    $region63: #{tpu_custom_call.1} parent=1 // pred_check_branch
      %1986 = sbr.rel (0) target = $region65
    $region64: #{tpu_custom_call.1} parent=1 // pred_region
      %1988 = dma.done [#allocation4], 2048
    $region65: #{tpu_custom_call.1} parent=1 // pred_fallthru
      _
    %1989 = vsyncpa [#allocation3], 1
    %1990 = vsyncpa [#allocation6], 1
    %1991 = vsyncpa [#allocation9], 1
    %1992 = vsyncpa [#allocation4], 1

</llo_original>
